<compile_context>
chip_gen: v6e
topology: v6e:2x2x1
jax: 0.10.0
libtpu: 0.0.40
codegen_flags: <defaults>
</compile_context>

<pallas_src>
import jax
import jax.numpy as jnp
import numpy as np
from jax.experimental import pallas as pl
from jax.experimental.pallas import tpu as pltpu


# ---------------------------------------------------------------------------
# Helpers
# ---------------------------------------------------------------------------
def _pad8(n):
    return ((n + 7) // 8) * 8


def _pick_tm(m, target=1024):
    """Largest multiple-of-8 divisor of m not exceeding `target`; keep >=2
    grid steps when possible so v7x's 2 TensorCores both get work."""
    best = None
    for t in range(8, min(m, target) + 1, 8):
        if m % t == 0:
            best = t
    if best is None:
        best = m                      # tiny / awkward batch: one full block
    if best == m and m >= 16 and (m // 2) % 8 == 0:
        best = m // 2                 # guarantee >= 2 parallel grid steps
    return best


# ---------------------------------------------------------------------------
# Parameter preparation: fold weights + pack everything into ONE slab
# ---------------------------------------------------------------------------
def prepare_flows(flows, d, c):
    """Fold raw flow parameters into kernel-friendly full-width arrays and
    pack them into a single (R, C) f32 slab (one DMA, static in-kernel
    unpacking)."""
    meta = []
    layout = []          # per-flow dict: name -> (row_offset, rows, cols)
    entries = []         # (row_offset, array)
    rows_so_far = 0
    C = 1
    total_sumlogs = jnp.zeros((1, 1), jnp.float32)

    def add(name, arr, flow_layout):
        nonlocal rows_so_far, C
        arr = arr.astype(jnp.float32)
        r, cc = arr.shape
        flow_layout[name] = (rows_so_far, r, cc)
        entries.append((rows_so_far, arr))
        rows_so_far += _pad8(r)       # keep every param 8-row aligned
        C = max(C, cc)

    for f in flows:
        L = {}
        if not f["requires_condition"]:
            meta.append("actnorm")
            add("scale", jnp.exp(f["log_scale"]), L)
            add("bias", f["bias"], L)
            total_sumlogs = total_sumlogs + jnp.sum(f["log_scale"]).reshape(1, 1)
        else:
            meta.append("coupling")
            dh = d // 2
            hidden = f["w1x"].shape[1]
            if f["flip"]:
                id_lo, tr_lo = dh, 0          # identity half / transformed half
            else:
                id_lo, tr_lo = 0, dh
            # Conditioner input weights: only the identity half of z feeds h.
            w1x_full = jnp.zeros((d, hidden), jnp.float32)
            w1x_full = w1x_full.at[id_lo:id_lo + dh, :].set(f["w1x"])
            # Output weights: identity-half columns zero so z*exp(tanh(0))+0==z
            # there (exact passthrough, exact log-det).
            w2s_full = jnp.zeros((hidden, d), jnp.float32)
            w2s_full = w2s_full.at[:, tr_lo:tr_lo + dh].set(f["w2s"])
            w2t_full = jnp.zeros((hidden, d), jnp.float32)
            w2t_full = w2t_full.at[:, tr_lo:tr_lo + dh].set(f["w2t"])
            b2s_full = jnp.zeros((1, d), jnp.float32)
            b2s_full = b2s_full.at[:, tr_lo:tr_lo + dh].set(f["b2s"])
            b2t_full = jnp.zeros((1, d), jnp.float32)
            b2t_full = b2t_full.at[:, tr_lo:tr_lo + dh].set(f["b2t"])
            add("w1x", w1x_full, L)
            add("w1c", f["w1c"], L)
            add("b1", f["b1"], L)
            add("w2s", w2s_full, L)
            add("w2t", w2t_full, L)
            add("b2s", b2s_full, L)
            add("b2t", b2t_full, L)
        layout.append(L)

    # Single batch-independent ActNorm log-det constant, added once at the end.
    sumlogs_row = rows_so_far
    entries.append((rows_so_far, total_sumlogs))
    rows_so_far += _pad8(1)

    slab = jnp.zeros((rows_so_far, C), jnp.float32)
    for r0, arr in entries:
        rr, cc = arr.shape
        slab = slab.at[r0:r0 + rr, 0:cc].set(arr)

    return {"slab": slab, "layout": layout, "meta": meta,
            "sumlogs_row": sumlogs_row, "d": d, "c": c}


# ---------------------------------------------------------------------------
# Fused kernel: delta subtraction + full flow stack + log-det accumulation
# ---------------------------------------------------------------------------
def _make_fused_kernel(meta, layout, sumlogs_row, n_flows):
    def kernel(x_ref, s_ref, cond_ref, p_ref, out_ref):
        tm, d = x_ref.shape
        cond = cond_ref[...]                              # (tm, c)
        z = x_ref[...] - s_ref[...]                       # DeltaFlow: x - condition['s']
        ld = jnp.zeros((tm, 1), jnp.float32)
        out_ref[0] = z                                    # zs[0] = delta

        for fi, kind in enumerate(meta):                  # static Python loop
            L = layout[fi]

            def load(name, _L=L):
                r0, rr, cc = _L[name]
                return p_ref[r0:r0 + rr, 0:cc]            # static slab slice

            if kind == "actnorm":
                z = z * load("scale") + load("bias")
                # batch-independent log-det constant folded in once at the end
            else:
                h = jnp.tanh(
                    jnp.dot(z, load("w1x"), preferred_element_type=jnp.float32)
                    + jnp.dot(cond, load("w1c"), preferred_element_type=jnp.float32)
                    + load("b1"))
                s_full = jnp.tanh(
                    jnp.dot(h, load("w2s"), preferred_element_type=jnp.float32)
                    + load("b2s"))
                t_full = (jnp.dot(h, load("w2t"), preferred_element_type=jnp.float32)
                          + load("b2t"))
                z = z * jnp.exp(s_full) + t_full          # identity half passes through
                ld = ld + jnp.sum(s_full, axis=1, keepdims=True)
            out_ref[fi + 1] = z                           # zs[fi+1]

        ld = ld + p_ref[sumlogs_row:sumlogs_row + 1, 0:1]   # total ActNorm log-det
        out_ref[n_flows + 1] = jnp.broadcast_to(ld, (tm, d))  # full-width store
    return kernel


# ---------------------------------------------------------------------------
# Wrapper mirroring DeltaFlow.forward(x, condition) -> (zs, log_det)
# ---------------------------------------------------------------------------
def delta_flow_forward(x, condition, prep, *, tm=None):
    m, d = x.shape
    s = condition["s"]
    cond = condition["feat"]
    c = cond.shape[1]
    meta, layout = prep["meta"], prep["layout"]
    slab = prep["slab"]
    n_flows = len(meta)
    n_slices = n_flows + 2                 # delta, z1..zn, log_det(broadcast)

    if tm is None:
        tm = _pick_tm(m)
    assert m % tm == 0

    kernel = _make_fused_kernel(meta, layout, prep["sumlogs_row"], n_flows)

    out = pl.pallas_call(
        kernel,
        grid=(m // tm,),
        in_specs=[
            pl.BlockSpec((tm, d), lambda i: (i, 0)),        # x
            pl.BlockSpec((tm, d), lambda i: (i, 0)),        # condition['s']
            pl.BlockSpec((tm, c), lambda i: (i, 0)),        # condition['feat']
            pl.BlockSpec(slab.shape, lambda i: (0, 0)),     # packed params (resident)
        ],
        out_specs=pl.BlockSpec((n_slices, tm, d), lambda i: (0, i, 0)),
        out_shape=jax.ShapeDtypeStruct((n_slices, m, d), jnp.float32),
        compiler_params=pltpu.CompilerParams(
            dimension_semantics=("parallel",)),
    )(x, s, cond, slab)

    zs = [out[i] for i in range(n_flows + 1)]
    log_det = out[n_flows + 1][:, 0]
    return zs, log_det


# ---------------------------------------------------------------------------
# Pure-JAX reference (original, un-fused math) for verification
# ---------------------------------------------------------------------------
def _ref_forward(x, condition, flows):
    s = condition["s"]
    cond = condition["feat"]
    m, _ = x.shape
    z = x - s                                   # DeltaFlow delta
    log_det = jnp.zeros((m,), jnp.float32)
    zs = [z]
    for f in flows:
        if f["requires_condition"]:
            d = z.shape[1]
            dh = d // 2
            if f["flip"]:
                x_id, x_tr = z[:, dh:], z[:, :dh]
            else:
                x_id, x_tr = z[:, :dh], z[:, dh:]
            h = jnp.tanh(x_id @ f["w1x"] + cond @ f["w1c"] + f["b1"])
            s_ = jnp.tanh(h @ f["w2s"] + f["b2s"])
            t_ = h @ f["w2t"] + f["b2t"]
            z_tr = x_tr * jnp.exp(s_) + t_
            z = (jnp.concatenate([z_tr, x_id], axis=1) if f["flip"]
                 else jnp.concatenate([x_id, z_tr], axis=1))
            ld = jnp.sum(s_, axis=1)
        else:
            z = z * jnp.exp(f["log_scale"]) + f["bias"]
            ld = jnp.broadcast_to(jnp.sum(f["log_scale"]), (m,))
        log_det = log_det + ld
        zs.append(z)
    return zs, log_det


# ---------------------------------------------------------------------------
# Deterministic parameter initialization (representative flow stack)
# ---------------------------------------------------------------------------
def init_actnorm(key, d):
    k1, k2 = jax.random.split(key)
    return {
        "requires_condition": False,
        "log_scale": 0.1 * jax.random.normal(k1, (1, d), jnp.float32),
        "bias": 0.1 * jax.random.normal(k2, (1, d), jnp.float32),
    }


def init_coupling(key, d, c, hidden, flip):
    dh = d // 2
    ks = jax.random.split(key, 4)
    scale = 0.1
    return {
        "requires_condition": True,
        "flip": flip,
        "w1x": scale * jax.random.normal(ks[0], (dh, hidden), jnp.float32),
        "w1c": scale * jax.random.normal(ks[1], (c, hidden), jnp.float32),
        "b1": jnp.zeros((1, hidden), jnp.float32),
        "w2s": scale * jax.random.normal(ks[2], (hidden, dh), jnp.float32),
        "w2t": scale * jax.random.normal(ks[3], (hidden, dh), jnp.float32),
        "b2s": jnp.zeros((1, dh), jnp.float32),
        "b2t": jnp.zeros((1, dh), jnp.float32),
    }


if __name__ == "__main__":
    m, d, c, hidden = 64, 16, 8, 32

    key = jax.random.PRNGKey(0)
    kx, ks, kf, k0, k1, k2, k3 = jax.random.split(key, 7)
    x = jax.random.normal(kx, (m, d), jnp.float32)
    s_cond = jax.random.normal(ks, (m, d), jnp.float32)     # condition['s']
    feat = jax.random.normal(kf, (m, c), jnp.float32)       # conditioning features
    condition = {"s": s_cond, "feat": feat}

    # TODO(synk): the flow list is not specified by the PyTorch module; this is a
    # representative ActNorm/conditional-coupling stack (backward/transform not needed).
    flows = [
        init_actnorm(k0, d),
        init_coupling(k1, d, c, hidden, flip=False),
        init_actnorm(k2, d),
        init_coupling(k3, d, c, hidden, flip=True),
    ]

    prep = prepare_flows(flows, d, c)
    zs, log_det = delta_flow_forward(x, condition, prep)
    jax.block_until_ready(log_det)
    for z in zs:
        jax.block_until_ready(z)

    zs_ref, log_det_ref = _ref_forward(x, condition, flows)
    for z, zr in zip(zs, zs_ref):
        np.testing.assert_allclose(np.asarray(z), np.asarray(zr), rtol=1e-5, atol=1e-5)
    np.testing.assert_allclose(np.asarray(log_det), np.asarray(log_det_ref),
                               rtol=1e-5, atol=1e-5)

    print("KERNEL_OK")
</pallas_src>

<mosaic_0001>
module attributes {stable_mosaic.version = 11 : i64} {
  func.func @kernel(%arg0: i32, %arg1: memref<32x16xf32, #tpu.memory_space<vmem>>, %arg2: memref<32x16xf32, #tpu.memory_space<vmem>>, %arg3: memref<32x8xf32, #tpu.memory_space<vmem>>, %arg4: memref<264x32xf32, #tpu.memory_space<vmem>>, %arg5: memref<6x32x16xf32, #tpu.memory_space<vmem>>) attributes {dimension_semantics = [#tpu.dimension_semantics<parallel>], iteration_bounds = array<i64: 2>, scalar_prefetch = 0 : i64, scratch_operands = 0 : i64, tpu.core_type = #tpu.core_type<tc>, window_params = [{transform_indices = @transform_0, window_bounds = array<i64: 32, 16>}, {transform_indices = @transform_1, window_bounds = array<i64: 32, 16>}, {transform_indices = @transform_2, window_bounds = array<i64: 32, 8>}, {pipeline_mode = #tpu.pipeline_mode<synchronous>, transform_indices = @transform_3, window_bounds = array<i64: 264, 32>}, {transform_indices = @transform_4, window_bounds = array<i64: 6, 32, 16>}]} {
    %c0 = arith.constant 0 : index
    %c0_0 = arith.constant 0 : index
    %0 = vector.load %arg3[%c0, %c0_0] : memref<32x8xf32, #tpu.memory_space<vmem>>, vector<32x8xf32>
    %c0_1 = arith.constant 0 : index
    %c0_2 = arith.constant 0 : index
    %1 = vector.load %arg1[%c0_1, %c0_2] : memref<32x16xf32, #tpu.memory_space<vmem>>, vector<32x16xf32>
    %c0_3 = arith.constant 0 : index
    %c0_4 = arith.constant 0 : index
    %2 = vector.load %arg2[%c0_3, %c0_4] : memref<32x16xf32, #tpu.memory_space<vmem>>, vector<32x16xf32>
    %3 = arith.subf %1, %2 : vector<32x16xf32>
    %cst = arith.constant 0.000000e+00 : f32
    %4 = vector.broadcast %cst : f32 to vector<32x1xf32>
    %c0_5 = arith.constant 0 : index
    %c0_6 = arith.constant 0 : index
    %c0_7 = arith.constant 0 : index
    %5 = vector.load %arg5[%c0_5, %c0_6, %c0_7] : memref<6x32x16xf32, #tpu.memory_space<vmem>>, vector<1x32x16xf32>
    %6 = vector.shape_cast %5 : vector<1x32x16xf32> to vector<32x16xf32>
    %7 = vector.shape_cast %3 : vector<32x16xf32> to vector<1x32x16xf32>
    tpu.vector_store %arg5[%c0_5, %c0_6, %c0_7], %7 {strides = array<i32>} : memref<6x32x16xf32, #tpu.memory_space<vmem>>, vector<1x32x16xf32>,
    %c0_8 = arith.constant 0 : index
    %c0_9 = arith.constant 0 : index
    %8 = vector.load %arg4[%c0_8, %c0_9] : memref<264x32xf32, #tpu.memory_space<vmem>>, vector<1x16xf32>
    %9 = vector.broadcast %8 : vector<1x16xf32> to vector<32x16xf32>
    %10 = arith.mulf %3, %9 : vector<32x16xf32>
    %c8 = arith.constant 8 : index
    %c0_10 = arith.constant 0 : index
    %11 = vector.load %arg4[%c8, %c0_10] : memref<264x32xf32, #tpu.memory_space<vmem>>, vector<1x16xf32>
    %12 = vector.broadcast %11 : vector<1x16xf32> to vector<32x16xf32>
    %13 = arith.addf %10, %12 : vector<32x16xf32>
    %c1 = arith.constant 1 : index
    %c0_11 = arith.constant 0 : index
    %c0_12 = arith.constant 0 : index
    %14 = vector.load %arg5[%c1, %c0_11, %c0_12] : memref<6x32x16xf32, #tpu.memory_space<vmem>>, vector<1x32x16xf32>
    %15 = vector.shape_cast %14 : vector<1x32x16xf32> to vector<32x16xf32>
    %16 = vector.shape_cast %13 : vector<32x16xf32> to vector<1x32x16xf32>
    tpu.vector_store %arg5[%c1, %c0_11, %c0_12], %16 {strides = array<i32>} : memref<6x32x16xf32, #tpu.memory_space<vmem>>, vector<1x32x16xf32>,
    %c16 = arith.constant 16 : index
    %c0_13 = arith.constant 0 : index
    %17 = vector.load %arg4[%c16, %c0_13] : memref<264x32xf32, #tpu.memory_space<vmem>>, vector<16x32xf32>
    %cst_14 = arith.constant dense<0.000000e+00> : vector<32x32xf32>
    %18 = tpu.matmul %13, %17, %cst_14 {dimension_numbers = #tpu.dot_dimension_numbers<[1], [0], [0], [1], [0, 0, 1, 1], [], []>} : vector<32x16xf32>, vector<16x32xf32>, vector<32x32xf32> -> vector<32x32xf32>
    %c32 = arith.constant 32 : index
    %c0_15 = arith.constant 0 : index
    %19 = vector.load %arg4[%c32, %c0_15] : memref<264x32xf32, #tpu.memory_space<vmem>>, vector<8x32xf32>
    %cst_16 = arith.constant dense<0.000000e+00> : vector<32x32xf32>
    %20 = tpu.matmul %0, %19, %cst_16 {dimension_numbers = #tpu.dot_dimension_numbers<[1], [0], [0], [1], [0, 0, 1, 1], [], []>} : vector<32x8xf32>, vector<8x32xf32>, vector<32x32xf32> -> vector<32x32xf32>
    %21 = arith.addf %18, %20 : vector<32x32xf32>
    %c40 = arith.constant 40 : index
    %c0_17 = arith.constant 0 : index
    %22 = vector.load %arg4[%c40, %c0_17] : memref<264x32xf32, #tpu.memory_space<vmem>>, vector<1x32xf32>
    %23 = vector.broadcast %22 : vector<1x32xf32> to vector<32x32xf32>
    %24 = arith.addf %21, %23 : vector<32x32xf32>
    %25 = math.tanh %24 : vector<32x32xf32>
    %c48 = arith.constant 48 : index
    %c0_18 = arith.constant 0 : index
    %26 = vector.load %arg4[%c48, %c0_18] : memref<264x32xf32, #tpu.memory_space<vmem>>, vector<32x16xf32>
    %cst_19 = arith.constant dense<0.000000e+00> : vector<32x16xf32>
    %27 = tpu.matmul %25, %26, %cst_19 {dimension_numbers = #tpu.dot_dimension_numbers<[1], [0], [0], [1], [0, 0, 1, 1], [], []>} : vector<32x32xf32>, vector<32x16xf32>, vector<32x16xf32> -> vector<32x16xf32>
    %c112 = arith.constant 112 : index
    %c0_20 = arith.constant 0 : index
    %28 = vector.load %arg4[%c112, %c0_20] : memref<264x32xf32, #tpu.memory_space<vmem>>, vector<1x16xf32>
    %29 = vector.broadcast %28 : vector<1x16xf32> to vector<32x16xf32>
    %30 = arith.addf %27, %29 : vector<32x16xf32>
    %31 = math.tanh %30 : vector<32x16xf32>
    %c80 = arith.constant 80 : index
    %c0_21 = arith.constant 0 : index
    %32 = vector.load %arg4[%c80, %c0_21] : memref<264x32xf32, #tpu.memory_space<vmem>>, vector<32x16xf32>
    %cst_22 = arith.constant dense<0.000000e+00> : vector<32x16xf32>
    %33 = tpu.matmul %25, %32, %cst_22 {dimension_numbers = #tpu.dot_dimension_numbers<[1], [0], [0], [1], [0, 0, 1, 1], [], []>} : vector<32x32xf32>, vector<32x16xf32>, vector<32x16xf32> -> vector<32x16xf32>
    %c120 = arith.constant 120 : index
    %c0_23 = arith.constant 0 : index
    %34 = vector.load %arg4[%c120, %c0_23] : memref<264x32xf32, #tpu.memory_space<vmem>>, vector<1x16xf32>
    %35 = vector.broadcast %34 : vector<1x16xf32> to vector<32x16xf32>
    %36 = arith.addf %33, %35 : vector<32x16xf32>
    %37 = math.exp %31 : vector<32x16xf32>
    %38 = arith.mulf %13, %37 : vector<32x16xf32>
    %39 = arith.addf %38, %36 : vector<32x16xf32>
    %cst_24 = arith.constant dense<0.000000e+00> : vector<32xf32>
    %40 = vector.multi_reduction <add>, %31, %cst_24 [1] : vector<32x16xf32> to vector<32xf32>
    %41 = vector.shape_cast %40 : vector<32xf32> to vector<32x1xf32>
    %42 = arith.addf %4, %41 : vector<32x1xf32>
    %c2 = arith.constant 2 : index
    %c0_25 = arith.constant 0 : index
    %c0_26 = arith.constant 0 : index
    %43 = vector.load %arg5[%c2, %c0_25, %c0_26] : memref<6x32x16xf32, #tpu.memory_space<vmem>>, vector<1x32x16xf32>
    %44 = vector.shape_cast %43 : vector<1x32x16xf32> to vector<32x16xf32>
    %45 = vector.shape_cast %39 : vector<32x16xf32> to vector<1x32x16xf32>
    tpu.vector_store %arg5[%c2, %c0_25, %c0_26], %45 {strides = array<i32>} : memref<6x32x16xf32, #tpu.memory_space<vmem>>, vector<1x32x16xf32>,
    %c128 = arith.constant 128 : index
    %c0_27 = arith.constant 0 : index
    %46 = vector.load %arg4[%c128, %c0_27] : memref<264x32xf32, #tpu.memory_space<vmem>>, vector<1x16xf32>
    %47 = vector.broadcast %46 : vector<1x16xf32> to vector<32x16xf32>
    %48 = arith.mulf %39, %47 : vector<32x16xf32>
    %c136 = arith.constant 136 : index
    %c0_28 = arith.constant 0 : index
    %49 = vector.load %arg4[%c136, %c0_28] : memref<264x32xf32, #tpu.memory_space<vmem>>, vector<1x16xf32>
    %50 = vector.broadcast %49 : vector<1x16xf32> to vector<32x16xf32>
    %51 = arith.addf %48, %50 : vector<32x16xf32>
    %c3 = arith.constant 3 : index
    %c0_29 = arith.constant 0 : index
    %c0_30 = arith.constant 0 : index
    %52 = vector.load %arg5[%c3, %c0_29, %c0_30] : memref<6x32x16xf32, #tpu.memory_space<vmem>>, vector<1x32x16xf32>
    %53 = vector.shape_cast %52 : vector<1x32x16xf32> to vector<32x16xf32>
    %54 = vector.shape_cast %51 : vector<32x16xf32> to vector<1x32x16xf32>
    tpu.vector_store %arg5[%c3, %c0_29, %c0_30], %54 {strides = array<i32>} : memref<6x32x16xf32, #tpu.memory_space<vmem>>, vector<1x32x16xf32>,
    %c144 = arith.constant 144 : index
    %c0_31 = arith.constant 0 : index
    %55 = vector.load %arg4[%c144, %c0_31] : memref<264x32xf32, #tpu.memory_space<vmem>>, vector<16x32xf32>
    %cst_32 = arith.constant dense<0.000000e+00> : vector<32x32xf32>
    %56 = tpu.matmul %51, %55, %cst_32 {dimension_numbers = #tpu.dot_dimension_numbers<[1], [0], [0], [1], [0, 0, 1, 1], [], []>} : vector<32x16xf32>, vector<16x32xf32>, vector<32x32xf32> -> vector<32x32xf32>
    %c160 = arith.constant 160 : index
    %c0_33 = arith.constant 0 : index
    %57 = vector.load %arg4[%c160, %c0_33] : memref<264x32xf32, #tpu.memory_space<vmem>>, vector<8x32xf32>
    %cst_34 = arith.constant dense<0.000000e+00> : vector<32x32xf32>
    %58 = tpu.matmul %0, %57, %cst_34 {dimension_numbers = #tpu.dot_dimension_numbers<[1], [0], [0], [1], [0, 0, 1, 1], [], []>} : vector<32x8xf32>, vector<8x32xf32>, vector<32x32xf32> -> vector<32x32xf32>
    %59 = arith.addf %56, %58 : vector<32x32xf32>
    %c168 = arith.constant 168 : index
    %c0_35 = arith.constant 0 : index
    %60 = vector.load %arg4[%c168, %c0_35] : memref<264x32xf32, #tpu.memory_space<vmem>>, vector<1x32xf32>
    %61 = vector.broadcast %60 : vector<1x32xf32> to vector<32x32xf32>
    %62 = arith.addf %59, %61 : vector<32x32xf32>
    %63 = math.tanh %62 : vector<32x32xf32>
    %c176 = arith.constant 176 : index
    %c0_36 = arith.constant 0 : index
    %64 = vector.load %arg4[%c176, %c0_36] : memref<264x32xf32, #tpu.memory_space<vmem>>, vector<32x16xf32>
    %cst_37 = arith.constant dense<0.000000e+00> : vector<32x16xf32>
    %65 = tpu.matmul %63, %64, %cst_37 {dimension_numbers = #tpu.dot_dimension_numbers<[1], [0], [0], [1], [0, 0, 1, 1], [], []>} : vector<32x32xf32>, vector<32x16xf32>, vector<32x16xf32> -> vector<32x16xf32>
    %c240 = arith.constant 240 : index
    %c0_38 = arith.constant 0 : index
    %66 = vector.load %arg4[%c240, %c0_38] : memref<264x32xf32, #tpu.memory_space<vmem>>, vector<1x16xf32>
    %67 = vector.broadcast %66 : vector<1x16xf32> to vector<32x16xf32>
    %68 = arith.addf %65, %67 : vector<32x16xf32>
    %69 = math.tanh %68 : vector<32x16xf32>
    %c208 = arith.constant 208 : index
    %c0_39 = arith.constant 0 : index
    %70 = vector.load %arg4[%c208, %c0_39] : memref<264x32xf32, #tpu.memory_space<vmem>>, vector<32x16xf32>
    %cst_40 = arith.constant dense<0.000000e+00> : vector<32x16xf32>
    %71 = tpu.matmul %63, %70, %cst_40 {dimension_numbers = #tpu.dot_dimension_numbers<[1], [0], [0], [1], [0, 0, 1, 1], [], []>} : vector<32x32xf32>, vector<32x16xf32>, vector<32x16xf32> -> vector<32x16xf32>
    %c248 = arith.constant 248 : index
    %c0_41 = arith.constant 0 : index
    %72 = vector.load %arg4[%c248, %c0_41] : memref<264x32xf32, #tpu.memory_space<vmem>>, vector<1x16xf32>
    %73 = vector.broadcast %72 : vector<1x16xf32> to vector<32x16xf32>
    %74 = arith.addf %71, %73 : vector<32x16xf32>
    %75 = math.exp %69 : vector<32x16xf32>
    %76 = arith.mulf %51, %75 : vector<32x16xf32>
    %77 = arith.addf %76, %74 : vector<32x16xf32>
    %cst_42 = arith.constant dense<0.000000e+00> : vector<32xf32>
    %78 = vector.multi_reduction <add>, %69, %cst_42 [1] : vector<32x16xf32> to vector<32xf32>
    %79 = vector.shape_cast %78 : vector<32xf32> to vector<32x1xf32>
    %80 = arith.addf %42, %79 : vector<32x1xf32>
    %c4 = arith.constant 4 : index
    %c0_43 = arith.constant 0 : index
    %c0_44 = arith.constant 0 : index
    %81 = vector.load %arg5[%c4, %c0_43, %c0_44] : memref<6x32x16xf32, #tpu.memory_space<vmem>>, vector<1x32x16xf32>
    %82 = vector.shape_cast %81 : vector<1x32x16xf32> to vector<32x16xf32>
    %83 = vector.shape_cast %77 : vector<32x16xf32> to vector<1x32x16xf32>
    tpu.vector_store %arg5[%c4, %c0_43, %c0_44], %83 {strides = array<i32>} : memref<6x32x16xf32, #tpu.memory_space<vmem>>, vector<1x32x16xf32>,
    %c256 = arith.constant 256 : index
    %c0_45 = arith.constant 0 : index
    %84 = vector.load %arg4[%c256, %c0_45] : memref<264x32xf32, #tpu.memory_space<vmem>>, vector<1x1xf32>
    %85 = vector.broadcast %84 : vector<1x1xf32> to vector<32x1xf32>
    %86 = arith.addf %80, %85 : vector<32x1xf32>
    %87 = vector.shape_cast %86 : vector<32x1xf32> to vector<32x1xf32>
    %88 = vector.broadcast %87 : vector<32x1xf32> to vector<32x16xf32>
    %c5 = arith.constant 5 : index
    %c0_46 = arith.constant 0 : index
    %c0_47 = arith.constant 0 : index
    %89 = vector.load %arg5[%c5, %c0_46, %c0_47] : memref<6x32x16xf32, #tpu.memory_space<vmem>>, vector<1x32x16xf32>
    %90 = vector.shape_cast %89 : vector<1x32x16xf32> to vector<32x16xf32>
    %91 = vector.shape_cast %88 : vector<32x16xf32> to vector<1x32x16xf32>
    tpu.vector_store %arg5[%c5, %c0_46, %c0_47], %91 {strides = array<i32>} : memref<6x32x16xf32, #tpu.memory_space<vmem>>, vector<1x32x16xf32>,
    return
  }
  func.func @transform_0(%arg0: i32) -> (i32, i32) {
    %c0_i32 = arith.constant 0 : i32
    %c0_i32_0 = arith.constant 0 : i32
    return %arg0, %c0_i32 : i32, i32
  }
  func.func @transform_1(%arg0: i32) -> (i32, i32) {
    %c0_i32 = arith.constant 0 : i32
    %c0_i32_0 = arith.constant 0 : i32
    return %arg0, %c0_i32 : i32, i32
  }
  func.func @transform_2(%arg0: i32) -> (i32, i32) {
    %c0_i32 = arith.constant 0 : i32
    %c0_i32_0 = arith.constant 0 : i32
    return %arg0, %c0_i32 : i32, i32
  }
  func.func @transform_3(%arg0: i32) -> (i32, i32) {
    %c0_i32 = arith.constant 0 : i32
    %c0_i32_0 = arith.constant 0 : i32
    %c0_i32_1 = arith.constant 0 : i32
    return %c0_i32, %c0_i32_0 : i32, i32
  }
  func.func @transform_4(%arg0: i32) -> (i32, i32, i32) {
    %c0_i32 = arith.constant 0 : i32
    %c0_i32_0 = arith.constant 0 : i32
    %c0_i32_1 = arith.constant 0 : i32
    return %c0_i32, %arg0, %c0_i32_0 : i32, i32, i32
  }
}

</mosaic_0001>

<llo_original>
// kernel: tpu_custom_call.1
$region0: #{tpu_custom_call.1}
  #allocation0 [shape = 'u32[]', space=smem, size = 0x4, offset = 0x4, fixed_abs, tag = 'smem constant byte address 0x4 - core index']
  #allocation1 [shape = 'u32[144,128]{1,0:T(1,128)}', space=vmem, size = 0x12000, scoped, tag = 'internal scratch']
  %s0 = inlined_call_operand.vmem [shape: f32[64,16], index: 0, kind: input, shape index: {}]
  %s1 = inlined_call_operand.vmem [shape: f32[64,16], index: 1, kind: input, shape index: {}]
  %s2 = inlined_call_operand.vmem [shape: f32[64,8], index: 2, kind: input, shape index: {}]
  %s3 = inlined_call_operand.vmem [shape: f32[264,32], index: 3, kind: input, shape index: {}]
  %s4 = inlined_call_operand.vmem [shape: f32[6,64,16], index: 4, kind: output, shape index: {}]
  %s5 = sld [smem:[#allocation0]]
  $region83: #{tpu_custom_call.1} parent=0
    _
  %s7 = ssub.s32 1, %s5
  %s8 = scalar_select 0, %s7, %s5
  $region1: #{tpu_custom_call.1} parent=0
    #allocation2 [shape = 'u8[196608]{0}', space=vmem, size = 0x30000, scoped, tag = 'output window, operand 0']
    loop: start=0, step=1, limit=4
    $region2: #{tpu_custom_call.1} parent=1 // loop_pre_header
      _
    $region3: #{tpu_custom_call.1} parent=1 // loop_header
      %s10 = sphi 0, %s14
      %p11 = scmp.ge.s32.totalorder %s10, 4
      %s20 = sphi 0, %s22
      %s23 = sphi 0, %s20
      %s24 = sphi 0, %s23
      %s40 = sphi 0, %s24
      %s46 = sphi 0, %s48
      %s49 = sphi 0, %s46
      %s50 = sphi 0, %s49
      %s66 = sphi 0, %s50
      %s72 = sphi 0, %s74
      %s75 = sphi 0, %s72
      %s76 = sphi 0, %s75
      %s92 = sphi 0, %s76
      %s96 = sphi 0, %s96
      %s98 = sphi 0, %s96
      %s99 = sphi 0, %s98
      %s113 = sphi 0, %s99
      %s119 = sphi 0, %s121
      %s122 = sphi 0, %s119
      %s123 = sphi 0, %s122
      %s139 = sphi 0, %s123
    $region4: #{tpu_custom_call.1} parent=1 // loop_header_branch
      %13 = sbr.rel (%p11) target = $region8
    $region5: #{tpu_custom_call.1} parent=1 // loop_body
      %s15 = ssub.s32 %s10, 1
      %s16 = ssub.s32 %s10, 2
      %s17 = sadd.s32 %s10, 1
      %s18 = ssub.s32 %s10, %s17
      %p19 = scmp.eq.s32.totalorder %s18, 0
      %s21 = sadd.s32 %s20, 1
      %s22 = scalar_select %p19, %s20, %s21
      %p25 = pneg %p19
      %p26 = scmp.eq.s32.totalorder %s10, 1
      %p27 = por %p25, %p26
      %p28 = scmp.ne.s32.totalorder %s20, %s23
      %p29 = scmp.eq.s32.totalorder %s10, 0
      %p30 = por %p28, %p29
      %p31 = scmp.ne.s32.totalorder %s20, %s23
      %p32 = scmp.eq.s32.totalorder %s15, 1
      %p33 = por %p31, %p32
      %p34 = scmp.ne.s32.totalorder %s23, %s24
      %p35 = scmp.eq.s32.totalorder %s15, 0
      %p36 = por %p34, %p35
      %p37 = scmp.ne.s32.totalorder %s23, %s24
      %p38 = scmp.eq.s32.totalorder %s16, 1
      %p39 = por %p37, %p38
      %p41 = scmp.ne.s32.totalorder %s24, %s40
      %p42 = scmp.eq.s32.totalorder %s16, 0
      %p43 = por %p41, %p42
      %s44 = ssub.s32 %s10, %s17
      %p45 = scmp.eq.s32.totalorder %s44, 0
      %s47 = sadd.s32 %s46, 1
      %s48 = scalar_select %p45, %s46, %s47
      %p51 = pneg %p45
      %p52 = scmp.eq.s32.totalorder %s10, 1
      %p53 = por %p51, %p52
      %p54 = scmp.ne.s32.totalorder %s46, %s49
      %p55 = scmp.eq.s32.totalorder %s10, 0
      %p56 = por %p54, %p55
      %p57 = scmp.ne.s32.totalorder %s46, %s49
      %p58 = scmp.eq.s32.totalorder %s15, 1
      %p59 = por %p57, %p58
      %p60 = scmp.ne.s32.totalorder %s49, %s50
      %p61 = scmp.eq.s32.totalorder %s15, 0
      %p62 = por %p60, %p61
      %p63 = scmp.ne.s32.totalorder %s49, %s50
      %p64 = scmp.eq.s32.totalorder %s16, 1
      %p65 = por %p63, %p64
      %p67 = scmp.ne.s32.totalorder %s50, %s66
      %p68 = scmp.eq.s32.totalorder %s16, 0
      %p69 = por %p67, %p68
      %s70 = ssub.s32 %s10, %s17
      %p71 = scmp.eq.s32.totalorder %s70, 0
      %s73 = sadd.s32 %s72, 1
      %s74 = scalar_select %p71, %s72, %s73
      %p77 = pneg %p71
      %p78 = scmp.eq.s32.totalorder %s10, 1
      %p79 = por %p77, %p78
      %p80 = scmp.ne.s32.totalorder %s72, %s75
      %p81 = scmp.eq.s32.totalorder %s10, 0
      %p82 = por %p80, %p81
      %p83 = scmp.ne.s32.totalorder %s72, %s75
      %p84 = scmp.eq.s32.totalorder %s15, 1
      %p85 = por %p83, %p84
      %p86 = scmp.ne.s32.totalorder %s75, %s76
      %p87 = scmp.eq.s32.totalorder %s15, 0
      %p88 = por %p86, %p87
      %p89 = scmp.ne.s32.totalorder %s75, %s76
      %p90 = scmp.eq.s32.totalorder %s16, 1
      %p91 = por %p89, %p90
      %p93 = scmp.ne.s32.totalorder %s76, %s92
      %p94 = scmp.eq.s32.totalorder %s16, 0
      %p95 = por %p93, %p94
      %s97 = sadd.s32 %s96, 1
      %p100 = scmp.eq.s32.totalorder %s10, 1
      %p101 = scmp.ne.s32.totalorder %s96, %s98
      %p102 = scmp.eq.s32.totalorder %s10, 0
      %p103 = por %p101, %p102
      %p104 = scmp.ne.s32.totalorder %s96, %s98
      %p105 = scmp.eq.s32.totalorder %s15, 1
      %p106 = por %p104, %p105
      %p107 = scmp.ne.s32.totalorder %s98, %s99
      %p108 = scmp.eq.s32.totalorder %s15, 0
      %p109 = por %p107, %p108
      %p110 = scmp.ne.s32.totalorder %s98, %s99
      %p111 = scmp.eq.s32.totalorder %s16, 1
      %p112 = por %p110, %p111
      %p114 = scmp.ne.s32.totalorder %s99, %s113
      %p115 = scmp.eq.s32.totalorder %s16, 0
      %p116 = por %p114, %p115
      %s117 = ssub.s32 %s10, %s17
      %p118 = scmp.eq.s32.totalorder %s117, 0
      %s120 = sadd.s32 %s119, 1
      %s121 = scalar_select %p118, %s119, %s120
      %p124 = pneg %p118
      %p125 = scmp.eq.s32.totalorder %s10, 1
      %p126 = por %p124, %p125
      %p127 = scmp.ne.s32.totalorder %s119, %s122
      %p128 = scmp.eq.s32.totalorder %s10, 0
      %p129 = por %p127, %p128
      %p130 = scmp.ne.s32.totalorder %s119, %s122
      %p131 = scmp.eq.s32.totalorder %s15, 1
      %p132 = por %p130, %p131
      %p133 = scmp.ne.s32.totalorder %s122, %s123
      %p134 = scmp.eq.s32.totalorder %s15, 0
      %p135 = por %p133, %p134
      %p136 = scmp.ne.s32.totalorder %s122, %s123
      %p137 = scmp.eq.s32.totalorder %s16, 1
      %p138 = por %p136, %p137
      %p140 = scmp.ne.s32.totalorder %s123, %s139
      %p141 = scmp.eq.s32.totalorder %s16, 0
      %p142 = por %p140, %p141
      %p143 = scmp.le.s32.totalorder 1, %s10
      %p144 = scmp.lt.s32.totalorder %s10, 3
      %p145 = pnand %p143, %p144
      %p146 = pneg %p145
      // Predicated region
      $region9: #{tpu_custom_call.1} parent=5 // pred_check
        _
      $region10: #{tpu_custom_call.1} parent=5 // pred_check_branch
        %148 = sbr.rel (%p145) target = $region12
      $region11: #{tpu_custom_call.1} parent=5 // pred_region
        %s149 = ssub.s32 %s10, 1
        // Predicated region
        $region13: #{tpu_custom_call.1} parent=11 // pred_check
          %p150 = pneg %p109
        $region14: #{tpu_custom_call.1} parent=11 // pred_check_branch
          %152 = sbr.rel (%p150) target = $region16
        $region15: #{tpu_custom_call.1} parent=11 // pred_region
          _
        $region16: #{tpu_custom_call.1} parent=11 // pred_fallthru
          _
      $region12: #{tpu_custom_call.1} parent=5 // pred_fallthru
        _
      %p153 = scmp.lt.s32.totalorder %s10, 2
      // Predicated region
      $region17: #{tpu_custom_call.1} parent=5 // pred_check
        %p154 = pneg %p153
      $region18: #{tpu_custom_call.1} parent=5 // pred_check_branch
        %156 = sbr.rel (%p154) target = $region20
      $region19: #{tpu_custom_call.1} parent=5 // pred_region
        // Predicated region
        $region21: #{tpu_custom_call.1} parent=19 // pred_check
          %p157 = pneg %p30
        $region22: #{tpu_custom_call.1} parent=19 // pred_check_branch
          %159 = sbr.rel (%p157) target = $region24
        $region23: #{tpu_custom_call.1} parent=19 // pred_region
          %s160 = smul.u32 4, %s10
          %p161 = scmp.lt.s32.totalorder %s160, 7
          %s162 = scalar_select %p161, %s160, 7
          %s163 = smul.addr %s162, 8
          %s164 = scalar_lea.vmem %s0, %s163
          %s165 = smul.u32 4, %s10
        $region24: #{tpu_custom_call.1} parent=19 // pred_fallthru
          _
        // Predicated region
        $region25: #{tpu_custom_call.1} parent=19 // pred_check
          %p166 = pneg %p56
        $region26: #{tpu_custom_call.1} parent=19 // pred_check_branch
          %168 = sbr.rel (%p166) target = $region28
        $region27: #{tpu_custom_call.1} parent=19 // pred_region
          %s169 = smul.u32 4, %s10
          %p170 = scmp.lt.s32.totalorder %s169, 7
          %s171 = scalar_select %p170, %s169, 7
          %s172 = smul.addr %s171, 8
          %s173 = scalar_lea.vmem %s1, %s172
          %s174 = smul.u32 4, %s10
        $region28: #{tpu_custom_call.1} parent=19 // pred_fallthru
          _
        // Predicated region
        $region29: #{tpu_custom_call.1} parent=19 // pred_check
          %p175 = pneg %p82
        $region30: #{tpu_custom_call.1} parent=19 // pred_check_branch
          %177 = sbr.rel (%p175) target = $region32
        $region31: #{tpu_custom_call.1} parent=19 // pred_region
          %s178 = smul.u32 4, %s10
          %p179 = scmp.lt.s32.totalorder %s178, 7
          %s180 = scalar_select %p179, %s178, 7
          %s181 = smul.addr %s180, 8
          %s182 = scalar_lea.vmem %s2, %s181
          %s183 = smul.u32 4, %s10
        $region32: #{tpu_custom_call.1} parent=19 // pred_fallthru
          _
      $region20: #{tpu_custom_call.1} parent=5 // pred_fallthru
        _
      %p184 = scmp.le.s32.totalorder 1, %s10
      %p185 = scmp.lt.s32.totalorder %s10, 3
      %p186 = pnand %p184, %p185
      %p187 = pneg %p186
      // Predicated region
      $region33: #{tpu_custom_call.1} parent=5 // pred_check
        _
      $region34: #{tpu_custom_call.1} parent=5 // pred_check_branch
        %189 = sbr.rel (%p186) target = $region36
      $region35: #{tpu_custom_call.1} parent=5 // pred_region
        %s190 = ssub.s32 %s10, 1
        %s191 = smul.u32 4, %s15
        %p192 = scmp.lt.s32.totalorder %s191, 7
        %s193 = scalar_select %p192, %s191, 7
        %s194 = smul.addr %s193, 8
        %s195 = scalar_lea.vmem %s0, %s194
        %p196 = pneg %p36
        %p197 = pneg %p33
        %s198 = smul.u32 4, %s15
        %p199 = scmp.lt.s32.totalorder %s198, 7
        %s200 = scalar_select %p199, %s198, 7
        %s201 = smul.addr %s200, 8
        %s202 = scalar_lea.vmem %s1, %s201
        %p203 = pneg %p62
        %p204 = pneg %p59
        %s205 = smul.u32 4, %s15
        %p206 = scmp.lt.s32.totalorder %s205, 7
        %s207 = scalar_select %p206, %s205, 7
        %s208 = smul.addr %s207, 8
        %s209 = scalar_lea.vmem %s2, %s208
        %p210 = pneg %p88
        %p211 = pneg %p85
        %p212 = pneg %p109
        %p213 = pneg %p106
        %p214 = pneg %p135
        %p215 = pneg %p132
        %s216 = sand.u32 %s122, 1
        %s217 = sand.u32 %s122, 1
        %s218 = smul.addr %s217, 192
        %s219 = scalar_lea.vmem [#allocation2], %s218
        %s220 = smul.u32 4, %s15
        %p221 = scmp.lt.s32.totalorder %s220, 7
        %s222 = scalar_select %p221, %s220, 7
        %s223 = smul.addr %s222, 8
        %s224 = scalar_lea.vmem %s0, %s223
        %s225 = smul.u32 4, %s15
        %s226 = smul.u32 4, %s15
        %p227 = scmp.lt.s32.totalorder %s226, 7
        %s228 = scalar_select %p227, %s226, 7
        %s229 = smul.addr %s228, 8
        %s230 = scalar_lea.vmem %s1, %s229
        %s231 = smul.u32 4, %s15
        %s232 = smul.u32 4, %s15
        %p233 = scmp.lt.s32.totalorder %s232, 7
        %s234 = scalar_select %p233, %s232, 7
        %s235 = smul.addr %s234, 8
        %s236 = scalar_lea.vmem %s2, %s235
        %s237 = smul.u32 4, %s15
        %s238 = smul.u32 4, %s15
        %v239 = vld [vmem:[%s236] sm:$0xff]
        %v240 = vld [vmem:[%s236 + $0x8] sm:$0xff]
        %v241 = vld [vmem:[%s236 + $0x10] sm:$0xff]
        %v242 = vld [vmem:[%s236 + $0x18] sm:$0xff]
        %v243 = vld [vmem:[%s224] sm:$0xff]
        %v244 = vld [vmem:[%s224 + $0x8] sm:$0xff]
        %v245 = vld [vmem:[%s224 + $0x10] sm:$0xff]
        %v246 = vld [vmem:[%s224 + $0x18] sm:$0xff]
        %v247 = vld [vmem:[%s230] sm:$0xff]
        %v248 = vld [vmem:[%s230 + $0x8] sm:$0xff]
        %v249 = vld [vmem:[%s230 + $0x10] sm:$0xff]
        %v250 = vld [vmem:[%s230 + $0x18] sm:$0xff]
        %v251 = vsub.f32 %v243, %v247
        %v252 = vsub.f32 %v244, %v248
        %v253 = vsub.f32 %v245, %v249
        %v254 = vsub.f32 %v246, %v250
        %vm255 = vcmask 130048
        %256 = vst.msk [vmem:[%s219] sm:$0xff] %vm255, %v251
        %257 = vst.msk [vmem:[%s219 + $0x8] sm:$0xff] %vm255, %v252
        %258 = vst.msk [vmem:[%s219 + $0x10] sm:$0xff] %vm255, %v253
        %259 = vst.msk [vmem:[%s219 + $0x18] sm:$0xff] %vm255, %v254
        %v260 = vld [vmem:[%s3] sm:$0x1]
        %v261 = vlaneseq
        %v262 = vshrl.u32 %v261, 7
        %v263 = vsub.s32 0, %v262
        %v264 = vrot.slane %v260, %v263
        %v265 = vmul.f32 %v251, %v264
        %v266 = vmul.f32 %v252, %v264
        %v267 = vmul.f32 %v253, %v264
        %v268 = vmul.f32 %v254, %v264
        %v269 = vld [vmem:[%s3 + $0x8] sm:$0x1]
        %v270 = vlaneseq
        %v271 = vshrl.u32 %v270, 7
        %v272 = vsub.s32 0, %v271
        %v273 = vrot.slane %v269, %v272
        %v274 = vadd.f32 %v265, %v273
        %v275 = vadd.f32 %v266, %v273
        %v276 = vadd.f32 %v267, %v273
        %v277 = vadd.f32 %v268, %v273
        %s278 = scalar_lea.vmem %s219, 32 [#allocation2]
        %279 = vst.msk [vmem:[%s278] sm:$0xff] %vm255, %v274
        %280 = vst.msk [vmem:[%s278 + $0x8] sm:$0xff] %vm255, %v275
        %281 = vst.msk [vmem:[%s278 + $0x10] sm:$0xff] %vm255, %v276
        %282 = vst.msk [vmem:[%s278 + $0x18] sm:$0xff] %vm255, %v277
        %v283 = vld [vmem:[%s3 + $0x10] sm:$0xff]
        %v284 = vld [vmem:[%s3 + $0x18] sm:$0xff]
        %v285 = vld [vmem:[%s3 + $0x20] sm:$0xff]
        %vm286 = vcmask 64512
        %v288 = vsel %vm286, %v239, 0
        %v291 = vsel %vm286, %v240, 0
        %v294 = vsel %vm286, %v241, 0
        %v297 = vsel %vm286, %v242, 0
        %299 = vmatprep.subr.mxu0 0.0
        %300 = vmatpush1.msra.mxu0 0.0
        %301 = vmatprep.subr.mxu0 0.0
        %302 = vmatpush1.msra.mxu0 0.0
        %303 = vmatprep.subr.mxu0 0.0
        %304 = vmatpush1.msra.mxu0 0.0
        %305 = vmatprep.subr.mxu0 0.0
        %306 = vmatpush1.msra.mxu0 0.0
        %307 = vmatprep.subr.mxu0 0.0
        %308 = vmatpush1.msra.mxu0 0.0
        %309 = vmatprep.subr.mxu0 0.0
        %310 = vmatpush1.msra.mxu0 0.0
        %311 = vmatprep.subr.mxu0 0.0
        %312 = vmatpush1.msra.mxu0 0.0
        %313 = vmatprep.subr.mxu0 0.0
        %314 = vmatpush1.msra.mxu0 0.0
        %315 = vmatprep.subr.mxu0 0.0
        %316 = vmatpush1.msra.mxu0 0.0
        %317 = vmatprep.subr.mxu0 0.0
        %318 = vmatpush1.msra.mxu0 0.0
        %319 = vmatprep.subr.mxu0 0.0
        %320 = vmatpush1.msra.mxu0 0.0
        %321 = vmatprep.subr.mxu0 0.0
        %322 = vmatpush1.msra.mxu0 0.0
        %323 = vmatprep.subr.mxu0 0.0
        %324 = vmatpush1.msra.mxu0 0.0
        %325 = vmatprep.subr.mxu0 0.0
        %326 = vmatpush1.msra.mxu0 0.0
        %327 = vmatprep.subr.mxu0 0.0
        %328 = vmatpush1.msra.mxu0 0.0
        %329 = vmatprep.subr.mxu0 0.0
        %330 = vmatpush1.msra.mxu0 %v285
        %331 = vmatprep.subr.mxu0 0.0
        %332 = vmatpush2.msra.mxu0 0.0
        %333 = vmatprep.subr.mxu0 0.0
        %334 = vmatpush2.msra.mxu0 0.0
        %335 = vmatprep.subr.mxu0 0.0
        %336 = vmatpush2.msra.mxu0 0.0
        %337 = vmatprep.subr.mxu0 0.0
        %338 = vmatpush2.msra.mxu0 0.0
        %339 = vmatprep.subr.mxu0 0.0
        %340 = vmatpush2.msra.mxu0 0.0
        %341 = vmatprep.subr.mxu0 0.0
        %342 = vmatpush2.msra.mxu0 0.0
        %343 = vmatprep.subr.mxu0 0.0
        %344 = vmatpush2.msra.mxu0 0.0
        %345 = vmatprep.subr.mxu0 0.0
        %346 = vmatpush2.msra.mxu0 0.0
        %347 = vmatprep.subr.mxu0 0.0
        %348 = vmatpush2.msra.mxu0 0.0
        %349 = vmatprep.subr.mxu0 0.0
        %350 = vmatpush2.msra.mxu0 0.0
        %351 = vmatprep.subr.mxu0 0.0
        %352 = vmatpush2.msra.mxu0 0.0
        %353 = vmatprep.subr.mxu0 0.0
        %354 = vmatpush2.msra.mxu0 0.0
        %355 = vmatprep.subr.mxu0 0.0
        %356 = vmatpush2.msra.mxu0 0.0
        %357 = vmatprep.subr.mxu0 0.0
        %358 = vmatpush2.msra.mxu0 0.0
        %359 = vmatprep.subr.mxu0 0.0
        %360 = vmatpush2.msra.mxu0 0.0
        %361 = vmatprep.subr.mxu0 0.0
        %362 = vmatpush2.msra.mxu0 0.0
        %363 = vmatprep.mubr.f32.mxu0 0.0
        %364 = vmatmul.mubr.f32.gmra.mxu0 %v288
        %v365 = vpop.f32.mrf.mxu0
        %v366 = vadd.f32 0.0, %v365
        %v367 = vpop.f32.mrf.mxu0
        %368 = vmatprep.mubr.f32.mxu0 0.0
        %369 = vmatmul.mubr.f32.gmra.mxu0 %v291
        %v370 = vpop.f32.mrf.mxu0
        %v371 = vadd.f32 0.0, %v370
        %v372 = vpop.f32.mrf.mxu0
        %373 = vmatprep.mubr.f32.mxu0 0.0
        %374 = vmatmul.mubr.f32.gmra.mxu0 %v294
        %v375 = vpop.f32.mrf.mxu0
        %v376 = vadd.f32 0.0, %v375
        %v377 = vpop.f32.mrf.mxu0
        %378 = vmatprep.mubr.f32.mxu0 0.0
        %379 = vmatmul.mubr.f32.gmra.mxu0 %v297
        %v380 = vpop.f32.mrf.mxu0
        %v381 = vadd.f32 0.0, %v380
        %v382 = vpop.f32.mrf.mxu0
        %383 = vdwg.mxu0
        %v385 = vsel %vm255, %v274, 0
        %v388 = vsel %vm255, %v275, 0
        %v391 = vsel %vm255, %v276, 0
        %v394 = vsel %vm255, %v277, 0
        %396 = vmatprep.subr.mxu0 0.0
        %397 = vmatpush1.msra.mxu0 0.0
        %398 = vmatprep.subr.mxu0 0.0
        %399 = vmatpush1.msra.mxu0 0.0
        %400 = vmatprep.subr.mxu0 0.0
        %401 = vmatpush1.msra.mxu0 0.0
        %402 = vmatprep.subr.mxu0 0.0
        %403 = vmatpush1.msra.mxu0 0.0
        %404 = vmatprep.subr.mxu0 0.0
        %405 = vmatpush1.msra.mxu0 0.0
        %406 = vmatprep.subr.mxu0 0.0
        %407 = vmatpush1.msra.mxu0 0.0
        %408 = vmatprep.subr.mxu0 0.0
        %409 = vmatpush1.msra.mxu0 0.0
        %410 = vmatprep.subr.mxu0 0.0
        %411 = vmatpush1.msra.mxu0 0.0
        %412 = vmatprep.subr.mxu0 0.0
        %413 = vmatpush1.msra.mxu0 0.0
        %414 = vmatprep.subr.mxu0 0.0
        %415 = vmatpush1.msra.mxu0 0.0
        %416 = vmatprep.subr.mxu0 0.0
        %417 = vmatpush1.msra.mxu0 0.0
        %418 = vmatprep.subr.mxu0 0.0
        %419 = vmatpush1.msra.mxu0 0.0
        %420 = vmatprep.subr.mxu0 0.0
        %421 = vmatpush1.msra.mxu0 0.0
        %422 = vmatprep.subr.mxu0 0.0
        %423 = vmatpush1.msra.mxu0 0.0
        %424 = vmatprep.subr.mxu0 0.0
        %425 = vmatpush1.msra.mxu0 %v284
        %426 = vmatprep.subr.mxu0 0.0
        %427 = vmatpush1.msra.mxu0 %v283
        %428 = vmatprep.subr.mxu0 0.0
        %429 = vmatpush2.msra.mxu0 0.0
        %430 = vmatprep.subr.mxu0 0.0
        %431 = vmatpush2.msra.mxu0 0.0
        %432 = vmatprep.subr.mxu0 0.0
        %433 = vmatpush2.msra.mxu0 0.0
        %434 = vmatprep.subr.mxu0 0.0
        %435 = vmatpush2.msra.mxu0 0.0
        %436 = vmatprep.subr.mxu0 0.0
        %437 = vmatpush2.msra.mxu0 0.0
        %438 = vmatprep.subr.mxu0 0.0
        %439 = vmatpush2.msra.mxu0 0.0
        %440 = vmatprep.subr.mxu0 0.0
        %441 = vmatpush2.msra.mxu0 0.0
        %442 = vmatprep.subr.mxu0 0.0
        %443 = vmatpush2.msra.mxu0 0.0
        %444 = vmatprep.subr.mxu0 0.0
        %445 = vmatpush2.msra.mxu0 0.0
        %446 = vmatprep.subr.mxu0 0.0
        %447 = vmatpush2.msra.mxu0 0.0
        %448 = vmatprep.subr.mxu0 0.0
        %449 = vmatpush2.msra.mxu0 0.0
        %450 = vmatprep.subr.mxu0 0.0
        %451 = vmatpush2.msra.mxu0 0.0
        %452 = vmatprep.subr.mxu0 0.0
        %453 = vmatpush2.msra.mxu0 0.0
        %454 = vmatprep.subr.mxu0 0.0
        %455 = vmatpush2.msra.mxu0 0.0
        %456 = vmatprep.subr.mxu0 0.0
        %457 = vmatpush2.msra.mxu0 0.0
        %458 = vmatprep.subr.mxu0 0.0
        %459 = vmatpush2.msra.mxu0 0.0
        %460 = vmatprep.mubr.f32.mxu0 0.0
        %461 = vmatmul.mubr.f32.gmra.mxu0 %v385
        %v462 = vpop.f32.mrf.mxu0
        %v463 = vadd.f32 %v366, %v462
        %v464 = vpop.f32.mrf.mxu0
        %465 = vmatprep.mubr.f32.mxu0 0.0
        %466 = vmatmul.mubr.f32.gmra.mxu0 %v388
        %v467 = vpop.f32.mrf.mxu0
        %v468 = vadd.f32 %v371, %v467
        %v469 = vpop.f32.mrf.mxu0
        %470 = vmatprep.mubr.f32.mxu0 0.0
        %471 = vmatmul.mubr.f32.gmra.mxu0 %v391
        %v472 = vpop.f32.mrf.mxu0
        %v473 = vadd.f32 %v376, %v472
        %v474 = vpop.f32.mrf.mxu0
        %475 = vmatprep.mubr.f32.mxu0 0.0
        %476 = vmatmul.mubr.f32.gmra.mxu0 %v394
        %v477 = vpop.f32.mrf.mxu0
        %v478 = vadd.f32 %v381, %v477
        %v479 = vpop.f32.mrf.mxu0
        %480 = vdwg.mxu0
        %v481 = vld [vmem:[%s3 + $0x28] sm:$0x1]
        %v482 = vlaneseq
        %v483 = vshrl.u32 %v482, 7
        %v484 = vsub.s32 0, %v483
        %v485 = vrot.slane %v481, %v484
        %v486 = vadd.f32 %v463, %v485
        %v487 = vadd.f32 %v468, %v485
        %v488 = vadd.f32 %v473, %v485
        %v489 = vadd.f32 %v478, %v485
        %v490 = vtanh.pop %v486
        %v491 = vtanh.pop %v487
        %v492 = vtanh.pop %v488
        %v493 = vtanh.pop %v489
        %v494 = vld [vmem:[%s3 + $0x30] sm:$0xff]
        %v495 = vld [vmem:[%s3 + $0x38] sm:$0xff]
        %v496 = vld [vmem:[%s3 + $0x40] sm:$0xff]
        %v497 = vld [vmem:[%s3 + $0x48] sm:$0xff]
        %v498 = vld [vmem:[%s3 + $0x70] sm:$0x1]
        %v499 = vlaneseq
        %v500 = vshrl.u32 %v499, 7
        %v501 = vsub.s32 0, %v500
        %v502 = vrot.slane %v498, %v501
        %vm503 = vcmask 261120
        %v505 = vsel %vm503, %v490, 0
        %v508 = vsel %vm503, %v491, 0
        %v511 = vsel %vm503, %v492, 0
        %v514 = vsel %vm503, %v493, 0
        %516 = vmatprep.subr.mxu0 0.0
        %517 = vmatpush1.msra.mxu0 0.0
        %518 = vmatprep.subr.mxu0 0.0
        %519 = vmatpush1.msra.mxu0 0.0
        %520 = vmatprep.subr.mxu0 0.0
        %521 = vmatpush1.msra.mxu0 0.0
        %522 = vmatprep.subr.mxu0 0.0
        %523 = vmatpush1.msra.mxu0 0.0
        %524 = vmatprep.subr.mxu0 0.0
        %525 = vmatpush1.msra.mxu0 0.0
        %526 = vmatprep.subr.mxu0 0.0
        %527 = vmatpush1.msra.mxu0 0.0
        %528 = vmatprep.subr.mxu0 0.0
        %529 = vmatpush1.msra.mxu0 0.0
        %530 = vmatprep.subr.mxu0 0.0
        %531 = vmatpush1.msra.mxu0 0.0
        %532 = vmatprep.subr.mxu0 0.0
        %533 = vmatpush1.msra.mxu0 0.0
        %534 = vmatprep.subr.mxu0 0.0
        %535 = vmatpush1.msra.mxu0 0.0
        %536 = vmatprep.subr.mxu0 0.0
        %537 = vmatpush1.msra.mxu0 0.0
        %538 = vmatprep.subr.mxu0 0.0
        %539 = vmatpush1.msra.mxu0 0.0
        %540 = vmatprep.subr.mxu0 0.0
        %541 = vmatpush1.msra.mxu0 %v497
        %542 = vmatprep.subr.mxu0 0.0
        %543 = vmatpush1.msra.mxu0 %v496
        %544 = vmatprep.subr.mxu0 0.0
        %545 = vmatpush1.msra.mxu0 %v495
        %546 = vmatprep.subr.mxu0 0.0
        %547 = vmatpush1.msra.mxu0 %v494
        %548 = vmatprep.subr.mxu0 0.0
        %549 = vmatpush2.msra.mxu0 0.0
        %550 = vmatprep.subr.mxu0 0.0
        %551 = vmatpush2.msra.mxu0 0.0
        %552 = vmatprep.subr.mxu0 0.0
        %553 = vmatpush2.msra.mxu0 0.0
        %554 = vmatprep.subr.mxu0 0.0
        %555 = vmatpush2.msra.mxu0 0.0
        %556 = vmatprep.subr.mxu0 0.0
        %557 = vmatpush2.msra.mxu0 0.0
        %558 = vmatprep.subr.mxu0 0.0
        %559 = vmatpush2.msra.mxu0 0.0
        %560 = vmatprep.subr.mxu0 0.0
        %561 = vmatpush2.msra.mxu0 0.0
        %562 = vmatprep.subr.mxu0 0.0
        %563 = vmatpush2.msra.mxu0 0.0
        %564 = vmatprep.subr.mxu0 0.0
        %565 = vmatpush2.msra.mxu0 0.0
        %566 = vmatprep.subr.mxu0 0.0
        %567 = vmatpush2.msra.mxu0 0.0
        %568 = vmatprep.subr.mxu0 0.0
        %569 = vmatpush2.msra.mxu0 0.0
        %570 = vmatprep.subr.mxu0 0.0
        %571 = vmatpush2.msra.mxu0 0.0
        %572 = vmatprep.subr.mxu0 0.0
        %573 = vmatpush2.msra.mxu0 0.0
        %574 = vmatprep.subr.mxu0 0.0
        %575 = vmatpush2.msra.mxu0 0.0
        %576 = vmatprep.subr.mxu0 0.0
        %577 = vmatpush2.msra.mxu0 0.0
        %578 = vmatprep.subr.mxu0 0.0
        %579 = vmatpush2.msra.mxu0 0.0
        %580 = vmatprep.mubr.f32.mxu0 0.0
        %581 = vmatmul.mubr.f32.gmra.mxu0 %v505
        %v582 = vpop.f32.mrf.mxu0
        %v583 = vadd.f32 %v502, %v582
        %v584 = vpop.f32.mrf.mxu0
        %585 = vmatprep.mubr.f32.mxu0 0.0
        %586 = vmatmul.mubr.f32.gmra.mxu0 %v508
        %v587 = vpop.f32.mrf.mxu0
        %v588 = vadd.f32 %v502, %v587
        %v589 = vpop.f32.mrf.mxu0
        %590 = vmatprep.mubr.f32.mxu0 0.0
        %591 = vmatmul.mubr.f32.gmra.mxu0 %v511
        %v592 = vpop.f32.mrf.mxu0
        %v593 = vadd.f32 %v502, %v592
        %v594 = vpop.f32.mrf.mxu0
        %595 = vmatprep.mubr.f32.mxu0 0.0
        %596 = vmatmul.mubr.f32.gmra.mxu0 %v514
        %v597 = vpop.f32.mrf.mxu0
        %v598 = vadd.f32 %v502, %v597
        %v599 = vpop.f32.mrf.mxu0
        %600 = vdwg.mxu0
        %v601 = vtanh.pop %v583
        %v602 = vtanh.pop %v588
        %v603 = vtanh.pop %v593
        %v604 = vtanh.pop %v598
        %v605 = vld [vmem:[%s3 + $0x50] sm:$0xff]
        %v606 = vld [vmem:[%s3 + $0x58] sm:$0xff]
        %v607 = vld [vmem:[%s3 + $0x60] sm:$0xff]
        %v608 = vld [vmem:[%s3 + $0x68] sm:$0xff]
        %v609 = vld [vmem:[%s3 + $0x78] sm:$0x1]
        %v610 = vlaneseq
        %v611 = vshrl.u32 %v610, 7
        %v612 = vsub.s32 0, %v611
        %v613 = vrot.slane %v609, %v612
        %614 = vmatprep.subr.mxu0 0.0
        %615 = vmatpush1.msra.mxu0 0.0
        %616 = vmatprep.subr.mxu0 0.0
        %617 = vmatpush1.msra.mxu0 0.0
        %618 = vmatprep.subr.mxu0 0.0
        %619 = vmatpush1.msra.mxu0 0.0
        %620 = vmatprep.subr.mxu0 0.0
        %621 = vmatpush1.msra.mxu0 0.0
        %622 = vmatprep.subr.mxu0 0.0
        %623 = vmatpush1.msra.mxu0 0.0
        %624 = vmatprep.subr.mxu0 0.0
        %625 = vmatpush1.msra.mxu0 0.0
        %626 = vmatprep.subr.mxu0 0.0
        %627 = vmatpush1.msra.mxu0 0.0
        %628 = vmatprep.subr.mxu0 0.0
        %629 = vmatpush1.msra.mxu0 0.0
        %630 = vmatprep.subr.mxu0 0.0
        %631 = vmatpush1.msra.mxu0 0.0
        %632 = vmatprep.subr.mxu0 0.0
        %633 = vmatpush1.msra.mxu0 0.0
        %634 = vmatprep.subr.mxu0 0.0
        %635 = vmatpush1.msra.mxu0 0.0
        %636 = vmatprep.subr.mxu0 0.0
        %637 = vmatpush1.msra.mxu0 0.0
        %638 = vmatprep.subr.mxu0 0.0
        %639 = vmatpush1.msra.mxu0 %v608
        %640 = vmatprep.subr.mxu0 0.0
        %641 = vmatpush1.msra.mxu0 %v607
        %642 = vmatprep.subr.mxu0 0.0
        %643 = vmatpush1.msra.mxu0 %v606
        %644 = vmatprep.subr.mxu0 0.0
        %645 = vmatpush1.msra.mxu0 %v605
        %646 = vmatprep.subr.mxu0 0.0
        %647 = vmatpush2.msra.mxu0 0.0
        %648 = vmatprep.subr.mxu0 0.0
        %649 = vmatpush2.msra.mxu0 0.0
        %650 = vmatprep.subr.mxu0 0.0
        %651 = vmatpush2.msra.mxu0 0.0
        %652 = vmatprep.subr.mxu0 0.0
        %653 = vmatpush2.msra.mxu0 0.0
        %654 = vmatprep.subr.mxu0 0.0
        %655 = vmatpush2.msra.mxu0 0.0
        %656 = vmatprep.subr.mxu0 0.0
        %657 = vmatpush2.msra.mxu0 0.0
        %658 = vmatprep.subr.mxu0 0.0
        %659 = vmatpush2.msra.mxu0 0.0
        %660 = vmatprep.subr.mxu0 0.0
        %661 = vmatpush2.msra.mxu0 0.0
        %662 = vmatprep.subr.mxu0 0.0
        %663 = vmatpush2.msra.mxu0 0.0
        %664 = vmatprep.subr.mxu0 0.0
        %665 = vmatpush2.msra.mxu0 0.0
        %666 = vmatprep.subr.mxu0 0.0
        %667 = vmatpush2.msra.mxu0 0.0
        %668 = vmatprep.subr.mxu0 0.0
        %669 = vmatpush2.msra.mxu0 0.0
        %670 = vmatprep.subr.mxu0 0.0
        %671 = vmatpush2.msra.mxu0 0.0
        %672 = vmatprep.subr.mxu0 0.0
        %673 = vmatpush2.msra.mxu0 0.0
        %674 = vmatprep.subr.mxu0 0.0
        %675 = vmatpush2.msra.mxu0 0.0
        %676 = vmatprep.subr.mxu0 0.0
        %677 = vmatpush2.msra.mxu0 0.0
        %678 = vmatprep.mubr.f32.mxu0 0.0
        %679 = vmatmul.mubr.f32.gmra.mxu0 %v505
        %v680 = vpop.f32.mrf.mxu0
        %v681 = vadd.f32 %v613, %v680
        %v682 = vpop.f32.mrf.mxu0
        %683 = vmatprep.mubr.f32.mxu0 0.0
        %684 = vmatmul.mubr.f32.gmra.mxu0 %v508
        %v685 = vpop.f32.mrf.mxu0
        %v686 = vadd.f32 %v613, %v685
        %v687 = vpop.f32.mrf.mxu0
        %688 = vmatprep.mubr.f32.mxu0 0.0
        %689 = vmatmul.mubr.f32.gmra.mxu0 %v511
        %v690 = vpop.f32.mrf.mxu0
        %v691 = vadd.f32 %v613, %v690
        %v692 = vpop.f32.mrf.mxu0
        %693 = vmatprep.mubr.f32.mxu0 0.0
        %694 = vmatmul.mubr.f32.gmra.mxu0 %v514
        %v695 = vpop.f32.mrf.mxu0
        %v696 = vadd.f32 %v613, %v695
        %v697 = vpop.f32.mrf.mxu0
        %698 = vdwg.mxu0
        %v699 = vmul.f32 %v601, 1.442695
        %v700 = vpow.pop %v699
        %v701 = vmul.f32 %v602, 1.442695
        %v702 = vpow.pop %v701
        %v703 = vmul.f32 %v603, 1.442695
        %v704 = vpow.pop %v703
        %v705 = vmul.f32 %v604, 1.442695
        %v706 = vpow.pop %v705
        %v707 = vmul.f32 %v274, %v700
        %v708 = vmul.f32 %v275, %v702
        %v709 = vmul.f32 %v276, %v704
        %v710 = vmul.f32 %v277, %v706
        %v711 = vadd.f32 %v707, %v681
        %v712 = vadd.f32 %v708, %v686
        %v713 = vadd.f32 %v709, %v691
        %v714 = vadd.f32 %v710, %v696
        %v715 = vsel %vm255, %v601, 0.0
        %716 = vadd.xlane.f32.xlu0 %v715
        %v717 = vpop.xlane.xlu0 %716
        %v718 = vsel %vm255, %v602, 0.0
        %719 = vadd.xlane.f32.xlu0 %v718
        %v720 = vpop.xlane.xlu0 %719
        %v721 = vsel %vm255, %v603, 0.0
        %722 = vadd.xlane.f32.xlu0 %v721
        %v723 = vpop.xlane.xlu0 %722
        %v724 = vsel %vm255, %v604, 0.0
        %725 = vadd.xlane.f32.xlu0 %v724
        %v726 = vpop.xlane.xlu0 %725
        %v727 = vadd.f32 %v717, 0.0
        %v728 = vadd.f32 %v720, 0.0
        %v729 = vadd.f32 %v723, 0.0
        %v730 = vadd.f32 %v726, 0.0
        %s731 = scalar_lea.vmem %s219, 64 [#allocation2]
        %732 = vst.msk [vmem:[%s731] sm:$0xff] %vm255, %v711
        %733 = vst.msk [vmem:[%s731 + $0x8] sm:$0xff] %vm255, %v712
        %734 = vst.msk [vmem:[%s731 + $0x10] sm:$0xff] %vm255, %v713
        %735 = vst.msk [vmem:[%s731 + $0x18] sm:$0xff] %vm255, %v714
        %v736 = vld [vmem:[%s3 + $0x80] sm:$0x1]
        %v737 = vlaneseq
        %v738 = vshrl.u32 %v737, 7
        %v739 = vsub.s32 0, %v738
        %v740 = vrot.slane %v736, %v739
        %v741 = vmul.f32 %v711, %v740
        %v742 = vmul.f32 %v712, %v740
        %v743 = vmul.f32 %v713, %v740
        %v744 = vmul.f32 %v714, %v740
        %v745 = vld [vmem:[%s3 + $0x88] sm:$0x1]
        %v746 = vlaneseq
        %v747 = vshrl.u32 %v746, 7
        %v748 = vsub.s32 0, %v747
        %v749 = vrot.slane %v745, %v748
        %v750 = vadd.f32 %v741, %v749
        %v751 = vadd.f32 %v742, %v749
        %v752 = vadd.f32 %v743, %v749
        %v753 = vadd.f32 %v744, %v749
        %s754 = scalar_lea.vmem %s219, 96 [#allocation2]
        %755 = vst.msk [vmem:[%s754] sm:$0xff] %vm255, %v750
        %756 = vst.msk [vmem:[%s754 + $0x8] sm:$0xff] %vm255, %v751
        %757 = vst.msk [vmem:[%s754 + $0x10] sm:$0xff] %vm255, %v752
        %758 = vst.msk [vmem:[%s754 + $0x18] sm:$0xff] %vm255, %v753
        %v759 = vld [vmem:[%s3 + $0x90] sm:$0xff]
        %v760 = vld [vmem:[%s3 + $0x98] sm:$0xff]
        %v761 = vld [vmem:[%s3 + $0xa0] sm:$0xff]
        %762 = vmatprep.subr.mxu0 0.0
        %763 = vmatpush1.msra.mxu0 0.0
        %764 = vmatprep.subr.mxu0 0.0
        %765 = vmatpush1.msra.mxu0 0.0
        %766 = vmatprep.subr.mxu0 0.0
        %767 = vmatpush1.msra.mxu0 0.0
        %768 = vmatprep.subr.mxu0 0.0
        %769 = vmatpush1.msra.mxu0 0.0
        %770 = vmatprep.subr.mxu0 0.0
        %771 = vmatpush1.msra.mxu0 0.0
        %772 = vmatprep.subr.mxu0 0.0
        %773 = vmatpush1.msra.mxu0 0.0
        %774 = vmatprep.subr.mxu0 0.0
        %775 = vmatpush1.msra.mxu0 0.0
        %776 = vmatprep.subr.mxu0 0.0
        %777 = vmatpush1.msra.mxu0 0.0
        %778 = vmatprep.subr.mxu0 0.0
        %779 = vmatpush1.msra.mxu0 0.0
        %780 = vmatprep.subr.mxu0 0.0
        %781 = vmatpush1.msra.mxu0 0.0
        %782 = vmatprep.subr.mxu0 0.0
        %783 = vmatpush1.msra.mxu0 0.0
        %784 = vmatprep.subr.mxu0 0.0
        %785 = vmatpush1.msra.mxu0 0.0
        %786 = vmatprep.subr.mxu0 0.0
        %787 = vmatpush1.msra.mxu0 0.0
        %788 = vmatprep.subr.mxu0 0.0
        %789 = vmatpush1.msra.mxu0 0.0
        %790 = vmatprep.subr.mxu0 0.0
        %791 = vmatpush1.msra.mxu0 0.0
        %792 = vmatprep.subr.mxu0 0.0
        %793 = vmatpush1.msra.mxu0 %v761
        %794 = vmatprep.subr.mxu0 0.0
        %795 = vmatpush2.msra.mxu0 0.0
        %796 = vmatprep.subr.mxu0 0.0
        %797 = vmatpush2.msra.mxu0 0.0
        %798 = vmatprep.subr.mxu0 0.0
        %799 = vmatpush2.msra.mxu0 0.0
        %800 = vmatprep.subr.mxu0 0.0
        %801 = vmatpush2.msra.mxu0 0.0
        %802 = vmatprep.subr.mxu0 0.0
        %803 = vmatpush2.msra.mxu0 0.0
        %804 = vmatprep.subr.mxu0 0.0
        %805 = vmatpush2.msra.mxu0 0.0
        %806 = vmatprep.subr.mxu0 0.0
        %807 = vmatpush2.msra.mxu0 0.0
        %808 = vmatprep.subr.mxu0 0.0
        %809 = vmatpush2.msra.mxu0 0.0
        %810 = vmatprep.subr.mxu0 0.0
        %811 = vmatpush2.msra.mxu0 0.0
        %812 = vmatprep.subr.mxu0 0.0
        %813 = vmatpush2.msra.mxu0 0.0
        %814 = vmatprep.subr.mxu0 0.0
        %815 = vmatpush2.msra.mxu0 0.0
        %816 = vmatprep.subr.mxu0 0.0
        %817 = vmatpush2.msra.mxu0 0.0
        %818 = vmatprep.subr.mxu0 0.0
        %819 = vmatpush2.msra.mxu0 0.0
        %820 = vmatprep.subr.mxu0 0.0
        %821 = vmatpush2.msra.mxu0 0.0
        %822 = vmatprep.subr.mxu0 0.0
        %823 = vmatpush2.msra.mxu0 0.0
        %824 = vmatprep.subr.mxu0 0.0
        %825 = vmatpush2.msra.mxu0 0.0
        %826 = vmatprep.mubr.f32.mxu0 0.0
        %827 = vmatmul.mubr.f32.gmra.mxu0 %v288
        %v828 = vpop.f32.mrf.mxu0
        %v829 = vadd.f32 0.0, %v828
        %v830 = vpop.f32.mrf.mxu0
        %831 = vmatprep.mubr.f32.mxu0 0.0
        %832 = vmatmul.mubr.f32.gmra.mxu0 %v291
        %v833 = vpop.f32.mrf.mxu0
        %v834 = vadd.f32 0.0, %v833
        %v835 = vpop.f32.mrf.mxu0
        %836 = vmatprep.mubr.f32.mxu0 0.0
        %837 = vmatmul.mubr.f32.gmra.mxu0 %v294
        %v838 = vpop.f32.mrf.mxu0
        %v839 = vadd.f32 0.0, %v838
        %v840 = vpop.f32.mrf.mxu0
        %841 = vmatprep.mubr.f32.mxu0 0.0
        %842 = vmatmul.mubr.f32.gmra.mxu0 %v297
        %v843 = vpop.f32.mrf.mxu0
        %v844 = vadd.f32 0.0, %v843
        %v845 = vpop.f32.mrf.mxu0
        %846 = vdwg.mxu0
        %v848 = vsel %vm255, %v750, 0
        %v851 = vsel %vm255, %v751, 0
        %v854 = vsel %vm255, %v752, 0
        %v857 = vsel %vm255, %v753, 0
        %859 = vmatprep.subr.mxu0 0.0
        %860 = vmatpush1.msra.mxu0 0.0
        %861 = vmatprep.subr.mxu0 0.0
        %862 = vmatpush1.msra.mxu0 0.0
        %863 = vmatprep.subr.mxu0 0.0
        %864 = vmatpush1.msra.mxu0 0.0
        %865 = vmatprep.subr.mxu0 0.0
        %866 = vmatpush1.msra.mxu0 0.0
        %867 = vmatprep.subr.mxu0 0.0
        %868 = vmatpush1.msra.mxu0 0.0
        %869 = vmatprep.subr.mxu0 0.0
        %870 = vmatpush1.msra.mxu0 0.0
        %871 = vmatprep.subr.mxu0 0.0
        %872 = vmatpush1.msra.mxu0 0.0
        %873 = vmatprep.subr.mxu0 0.0
        %874 = vmatpush1.msra.mxu0 0.0
        %875 = vmatprep.subr.mxu0 0.0
        %876 = vmatpush1.msra.mxu0 0.0
        %877 = vmatprep.subr.mxu0 0.0
        %878 = vmatpush1.msra.mxu0 0.0
        %879 = vmatprep.subr.mxu0 0.0
        %880 = vmatpush1.msra.mxu0 0.0
        %881 = vmatprep.subr.mxu0 0.0
        %882 = vmatpush1.msra.mxu0 0.0
        %883 = vmatprep.subr.mxu0 0.0
        %884 = vmatpush1.msra.mxu0 0.0
        %885 = vmatprep.subr.mxu0 0.0
        %886 = vmatpush1.msra.mxu0 0.0
        %887 = vmatprep.subr.mxu0 0.0
        %888 = vmatpush1.msra.mxu0 %v760
        %889 = vmatprep.subr.mxu0 0.0
        %890 = vmatpush1.msra.mxu0 %v759
        %891 = vmatprep.subr.mxu0 0.0
        %892 = vmatpush2.msra.mxu0 0.0
        %893 = vmatprep.subr.mxu0 0.0
        %894 = vmatpush2.msra.mxu0 0.0
        %895 = vmatprep.subr.mxu0 0.0
        %896 = vmatpush2.msra.mxu0 0.0
        %897 = vmatprep.subr.mxu0 0.0
        %898 = vmatpush2.msra.mxu0 0.0
        %899 = vmatprep.subr.mxu0 0.0
        %900 = vmatpush2.msra.mxu0 0.0
        %901 = vmatprep.subr.mxu0 0.0
        %902 = vmatpush2.msra.mxu0 0.0
        %903 = vmatprep.subr.mxu0 0.0
        %904 = vmatpush2.msra.mxu0 0.0
        %905 = vmatprep.subr.mxu0 0.0
        %906 = vmatpush2.msra.mxu0 0.0
        %907 = vmatprep.subr.mxu0 0.0
        %908 = vmatpush2.msra.mxu0 0.0
        %909 = vmatprep.subr.mxu0 0.0
        %910 = vmatpush2.msra.mxu0 0.0
        %911 = vmatprep.subr.mxu0 0.0
        %912 = vmatpush2.msra.mxu0 0.0
        %913 = vmatprep.subr.mxu0 0.0
        %914 = vmatpush2.msra.mxu0 0.0
        %915 = vmatprep.subr.mxu0 0.0
        %916 = vmatpush2.msra.mxu0 0.0
        %917 = vmatprep.subr.mxu0 0.0
        %918 = vmatpush2.msra.mxu0 0.0
        %919 = vmatprep.subr.mxu0 0.0
        %920 = vmatpush2.msra.mxu0 0.0
        %921 = vmatprep.subr.mxu0 0.0
        %922 = vmatpush2.msra.mxu0 0.0
        %923 = vmatprep.mubr.f32.mxu0 0.0
        %924 = vmatmul.mubr.f32.gmra.mxu0 %v848
        %v925 = vpop.f32.mrf.mxu0
        %v926 = vadd.f32 %v829, %v925
        %v927 = vpop.f32.mrf.mxu0
        %928 = vmatprep.mubr.f32.mxu0 0.0
        %929 = vmatmul.mubr.f32.gmra.mxu0 %v851
        %v930 = vpop.f32.mrf.mxu0
        %v931 = vadd.f32 %v834, %v930
        %v932 = vpop.f32.mrf.mxu0
        %933 = vmatprep.mubr.f32.mxu0 0.0
        %934 = vmatmul.mubr.f32.gmra.mxu0 %v854
        %v935 = vpop.f32.mrf.mxu0
        %v936 = vadd.f32 %v839, %v935
        %v937 = vpop.f32.mrf.mxu0
        %938 = vmatprep.mubr.f32.mxu0 0.0
        %939 = vmatmul.mubr.f32.gmra.mxu0 %v857
        %v940 = vpop.f32.mrf.mxu0
        %v941 = vadd.f32 %v844, %v940
        %v942 = vpop.f32.mrf.mxu0
        %943 = vdwg.mxu0
        %v944 = vld [vmem:[%s3 + $0xa8] sm:$0x1]
        %v945 = vlaneseq
        %v946 = vshrl.u32 %v945, 7
        %v947 = vsub.s32 0, %v946
        %v948 = vrot.slane %v944, %v947
        %v949 = vadd.f32 %v926, %v948
        %v950 = vadd.f32 %v931, %v948
        %v951 = vadd.f32 %v936, %v948
        %v952 = vadd.f32 %v941, %v948
        %v953 = vtanh.pop %v949
        %v954 = vtanh.pop %v950
        %v955 = vtanh.pop %v951
        %v956 = vtanh.pop %v952
        %v957 = vld [vmem:[%s3 + $0xb0] sm:$0xff]
        %v958 = vld [vmem:[%s3 + $0xb8] sm:$0xff]
        %v959 = vld [vmem:[%s3 + $0xc0] sm:$0xff]
        %v960 = vld [vmem:[%s3 + $0xc8] sm:$0xff]
        %v961 = vld [vmem:[%s3 + $0xf0] sm:$0x1]
        %v962 = vlaneseq
        %v963 = vshrl.u32 %v962, 7
        %v964 = vsub.s32 0, %v963
        %v965 = vrot.slane %v961, %v964
        %v967 = vsel %vm503, %v953, 0
        %v970 = vsel %vm503, %v954, 0
        %v973 = vsel %vm503, %v955, 0
        %v976 = vsel %vm503, %v956, 0
        %978 = vmatprep.subr.mxu0 0.0
        %979 = vmatpush1.msra.mxu0 0.0
        %980 = vmatprep.subr.mxu0 0.0
        %981 = vmatpush1.msra.mxu0 0.0
        %982 = vmatprep.subr.mxu0 0.0
        %983 = vmatpush1.msra.mxu0 0.0
        %984 = vmatprep.subr.mxu0 0.0
        %985 = vmatpush1.msra.mxu0 0.0
        %986 = vmatprep.subr.mxu0 0.0
        %987 = vmatpush1.msra.mxu0 0.0
        %988 = vmatprep.subr.mxu0 0.0
        %989 = vmatpush1.msra.mxu0 0.0
        %990 = vmatprep.subr.mxu0 0.0
        %991 = vmatpush1.msra.mxu0 0.0
        %992 = vmatprep.subr.mxu0 0.0
        %993 = vmatpush1.msra.mxu0 0.0
        %994 = vmatprep.subr.mxu0 0.0
        %995 = vmatpush1.msra.mxu0 0.0
        %996 = vmatprep.subr.mxu0 0.0
        %997 = vmatpush1.msra.mxu0 0.0
        %998 = vmatprep.subr.mxu0 0.0
        %999 = vmatpush1.msra.mxu0 0.0
        %1000 = vmatprep.subr.mxu0 0.0
        %1001 = vmatpush1.msra.mxu0 0.0
        %1002 = vmatprep.subr.mxu0 0.0
        %1003 = vmatpush1.msra.mxu0 %v960
        %1004 = vmatprep.subr.mxu0 0.0
        %1005 = vmatpush1.msra.mxu0 %v959
        %1006 = vmatprep.subr.mxu0 0.0
        %1007 = vmatpush1.msra.mxu0 %v958
        %1008 = vmatprep.subr.mxu0 0.0
        %1009 = vmatpush1.msra.mxu0 %v957
        %1010 = vmatprep.subr.mxu0 0.0
        %1011 = vmatpush2.msra.mxu0 0.0
        %1012 = vmatprep.subr.mxu0 0.0
        %1013 = vmatpush2.msra.mxu0 0.0
        %1014 = vmatprep.subr.mxu0 0.0
        %1015 = vmatpush2.msra.mxu0 0.0
        %1016 = vmatprep.subr.mxu0 0.0
        %1017 = vmatpush2.msra.mxu0 0.0
        %1018 = vmatprep.subr.mxu0 0.0
        %1019 = vmatpush2.msra.mxu0 0.0
        %1020 = vmatprep.subr.mxu0 0.0
        %1021 = vmatpush2.msra.mxu0 0.0
        %1022 = vmatprep.subr.mxu0 0.0
        %1023 = vmatpush2.msra.mxu0 0.0
        %1024 = vmatprep.subr.mxu0 0.0
        %1025 = vmatpush2.msra.mxu0 0.0
        %1026 = vmatprep.subr.mxu0 0.0
        %1027 = vmatpush2.msra.mxu0 0.0
        %1028 = vmatprep.subr.mxu0 0.0
        %1029 = vmatpush2.msra.mxu0 0.0
        %1030 = vmatprep.subr.mxu0 0.0
        %1031 = vmatpush2.msra.mxu0 0.0
        %1032 = vmatprep.subr.mxu0 0.0
        %1033 = vmatpush2.msra.mxu0 0.0
        %1034 = vmatprep.subr.mxu0 0.0
        %1035 = vmatpush2.msra.mxu0 0.0
        %1036 = vmatprep.subr.mxu0 0.0
        %1037 = vmatpush2.msra.mxu0 0.0
        %1038 = vmatprep.subr.mxu0 0.0
        %1039 = vmatpush2.msra.mxu0 0.0
        %1040 = vmatprep.subr.mxu0 0.0
        %1041 = vmatpush2.msra.mxu0 0.0
        %1042 = vmatprep.mubr.f32.mxu0 0.0
        %1043 = vmatmul.mubr.f32.gmra.mxu0 %v967
        %v1044 = vpop.f32.mrf.mxu0
        %v1045 = vadd.f32 %v965, %v1044
        %v1046 = vpop.f32.mrf.mxu0
        %1047 = vmatprep.mubr.f32.mxu0 0.0
        %1048 = vmatmul.mubr.f32.gmra.mxu0 %v970
        %v1049 = vpop.f32.mrf.mxu0
        %v1050 = vadd.f32 %v965, %v1049
        %v1051 = vpop.f32.mrf.mxu0
        %1052 = vmatprep.mubr.f32.mxu0 0.0
        %1053 = vmatmul.mubr.f32.gmra.mxu0 %v973
        %v1054 = vpop.f32.mrf.mxu0
        %v1055 = vadd.f32 %v965, %v1054
        %v1056 = vpop.f32.mrf.mxu0
        %1057 = vmatprep.mubr.f32.mxu0 0.0
        %1058 = vmatmul.mubr.f32.gmra.mxu0 %v976
        %v1059 = vpop.f32.mrf.mxu0
        %v1060 = vadd.f32 %v965, %v1059
        %v1061 = vpop.f32.mrf.mxu0
        %1062 = vdwg.mxu0
        %v1063 = vtanh.pop %v1045
        %v1064 = vtanh.pop %v1050
        %v1065 = vtanh.pop %v1055
        %v1066 = vtanh.pop %v1060
        %v1067 = vld [vmem:[%s3 + $0xd0] sm:$0xff]
        %v1068 = vld [vmem:[%s3 + $0xd8] sm:$0xff]
        %v1069 = vld [vmem:[%s3 + $0xe0] sm:$0xff]
        %v1070 = vld [vmem:[%s3 + $0xe8] sm:$0xff]
        %v1071 = vld [vmem:[%s3 + $0xf8] sm:$0x1]
        %v1072 = vlaneseq
        %v1073 = vshrl.u32 %v1072, 7
        %v1074 = vsub.s32 0, %v1073
        %v1075 = vrot.slane %v1071, %v1074
        %1076 = vmatprep.subr.mxu0 0.0
        %1077 = vmatpush1.msra.mxu0 0.0
        %1078 = vmatprep.subr.mxu0 0.0
        %1079 = vmatpush1.msra.mxu0 0.0
        %1080 = vmatprep.subr.mxu0 0.0
        %1081 = vmatpush1.msra.mxu0 0.0
        %1082 = vmatprep.subr.mxu0 0.0
        %1083 = vmatpush1.msra.mxu0 0.0
        %1084 = vmatprep.subr.mxu0 0.0
        %1085 = vmatpush1.msra.mxu0 0.0
        %1086 = vmatprep.subr.mxu0 0.0
        %1087 = vmatpush1.msra.mxu0 0.0
        %1088 = vmatprep.subr.mxu0 0.0
        %1089 = vmatpush1.msra.mxu0 0.0
        %1090 = vmatprep.subr.mxu0 0.0
        %1091 = vmatpush1.msra.mxu0 0.0
        %1092 = vmatprep.subr.mxu0 0.0
        %1093 = vmatpush1.msra.mxu0 0.0
        %1094 = vmatprep.subr.mxu0 0.0
        %1095 = vmatpush1.msra.mxu0 0.0
        %1096 = vmatprep.subr.mxu0 0.0
        %1097 = vmatpush1.msra.mxu0 0.0
        %1098 = vmatprep.subr.mxu0 0.0
        %1099 = vmatpush1.msra.mxu0 0.0
        %1100 = vmatprep.subr.mxu0 0.0
        %1101 = vmatpush1.msra.mxu0 %v1070
        %1102 = vmatprep.subr.mxu0 0.0
        %1103 = vmatpush1.msra.mxu0 %v1069
        %1104 = vmatprep.subr.mxu0 0.0
        %1105 = vmatpush1.msra.mxu0 %v1068
        %1106 = vmatprep.subr.mxu0 0.0
        %1107 = vmatpush1.msra.mxu0 %v1067
        %1108 = vmatprep.subr.mxu0 0.0
        %1109 = vmatpush2.msra.mxu0 0.0
        %1110 = vmatprep.subr.mxu0 0.0
        %1111 = vmatpush2.msra.mxu0 0.0
        %1112 = vmatprep.subr.mxu0 0.0
        %1113 = vmatpush2.msra.mxu0 0.0
        %1114 = vmatprep.subr.mxu0 0.0
        %1115 = vmatpush2.msra.mxu0 0.0
        %1116 = vmatprep.subr.mxu0 0.0
        %1117 = vmatpush2.msra.mxu0 0.0
        %1118 = vmatprep.subr.mxu0 0.0
        %1119 = vmatpush2.msra.mxu0 0.0
        %1120 = vmatprep.subr.mxu0 0.0
        %1121 = vmatpush2.msra.mxu0 0.0
        %1122 = vmatprep.subr.mxu0 0.0
        %1123 = vmatpush2.msra.mxu0 0.0
        %1124 = vmatprep.subr.mxu0 0.0
        %1125 = vmatpush2.msra.mxu0 0.0
        %1126 = vmatprep.subr.mxu0 0.0
        %1127 = vmatpush2.msra.mxu0 0.0
        %1128 = vmatprep.subr.mxu0 0.0
        %1129 = vmatpush2.msra.mxu0 0.0
        %1130 = vmatprep.subr.mxu0 0.0
        %1131 = vmatpush2.msra.mxu0 0.0
        %1132 = vmatprep.subr.mxu0 0.0
        %1133 = vmatpush2.msra.mxu0 0.0
        %1134 = vmatprep.subr.mxu0 0.0
        %1135 = vmatpush2.msra.mxu0 0.0
        %1136 = vmatprep.subr.mxu0 0.0
        %1137 = vmatpush2.msra.mxu0 0.0
        %1138 = vmatprep.subr.mxu0 0.0
        %1139 = vmatpush2.msra.mxu0 0.0
        %1140 = vmatprep.mubr.f32.mxu0 0.0
        %1141 = vmatmul.mubr.f32.gmra.mxu0 %v967
        %v1142 = vpop.f32.mrf.mxu0
        %v1143 = vadd.f32 %v1075, %v1142
        %v1144 = vpop.f32.mrf.mxu0
        %1145 = vmatprep.mubr.f32.mxu0 0.0
        %1146 = vmatmul.mubr.f32.gmra.mxu0 %v970
        %v1147 = vpop.f32.mrf.mxu0
        %v1148 = vadd.f32 %v1075, %v1147
        %v1149 = vpop.f32.mrf.mxu0
        %1150 = vmatprep.mubr.f32.mxu0 0.0
        %1151 = vmatmul.mubr.f32.gmra.mxu0 %v973
        %v1152 = vpop.f32.mrf.mxu0
        %v1153 = vadd.f32 %v1075, %v1152
        %v1154 = vpop.f32.mrf.mxu0
        %1155 = vmatprep.mubr.f32.mxu0 0.0
        %1156 = vmatmul.mubr.f32.gmra.mxu0 %v976
        %v1157 = vpop.f32.mrf.mxu0
        %v1158 = vadd.f32 %v1075, %v1157
        %v1159 = vpop.f32.mrf.mxu0
        %1160 = vdwg.mxu0
        %v1161 = vmul.f32 %v1063, 1.442695
        %v1162 = vpow.pop %v1161
        %v1163 = vmul.f32 %v1064, 1.442695
        %v1164 = vpow.pop %v1163
        %v1165 = vmul.f32 %v1065, 1.442695
        %v1166 = vpow.pop %v1165
        %v1167 = vmul.f32 %v1066, 1.442695
        %v1168 = vpow.pop %v1167
        %v1169 = vmul.f32 %v750, %v1162
        %v1170 = vmul.f32 %v751, %v1164
        %v1171 = vmul.f32 %v752, %v1166
        %v1172 = vmul.f32 %v753, %v1168
        %v1173 = vadd.f32 %v1169, %v1143
        %v1174 = vadd.f32 %v1170, %v1148
        %v1175 = vadd.f32 %v1171, %v1153
        %v1176 = vadd.f32 %v1172, %v1158
        %v1177 = vsel %vm255, %v1063, 0.0
        %1178 = vadd.xlane.f32.xlu0 %v1177
        %v1179 = vpop.xlane.xlu0 %1178
        %v1180 = vsel %vm255, %v1064, 0.0
        %1181 = vadd.xlane.f32.xlu0 %v1180
        %v1182 = vpop.xlane.xlu0 %1181
        %v1183 = vsel %vm255, %v1065, 0.0
        %1184 = vadd.xlane.f32.xlu0 %v1183
        %v1185 = vpop.xlane.xlu0 %1184
        %v1186 = vsel %vm255, %v1066, 0.0
        %1187 = vadd.xlane.f32.xlu0 %v1186
        %v1188 = vpop.xlane.xlu0 %1187
        %v1189 = vadd.f32 %v727, %v1179
        %v1190 = vadd.f32 %v728, %v1182
        %v1191 = vadd.f32 %v729, %v1185
        %v1192 = vadd.f32 %v730, %v1188
        %s1193 = scalar_lea.vmem %s219, 128 [#allocation2]
        %1194 = vst.msk [vmem:[%s1193] sm:$0xff] %vm255, %v1173
        %1195 = vst.msk [vmem:[%s1193 + $0x8] sm:$0xff] %vm255, %v1174
        %1196 = vst.msk [vmem:[%s1193 + $0x10] sm:$0xff] %vm255, %v1175
        %1197 = vst.msk [vmem:[%s1193 + $0x18] sm:$0xff] %vm255, %v1176
        %v1198 = vld [vmem:[%s3 + $0x100] sm:$0x1]
        %v1199 = vlaneseq
        %v1200 = vshrl.u32 %v1199, 7
        %v1201 = vsub.s32 0, %v1200
        %v1202 = vrot.slane %v1198, %v1201
        %v1203 = vadd.f32 %v1189, %v1202
        %v1204 = vadd.f32 %v1190, %v1202
        %v1205 = vadd.f32 %v1191, %v1202
        %v1206 = vadd.f32 %v1192, %v1202
        %1208 = vset.pattern.permute.xlu0 0
        %1209 = vperm.xlu0 %1208, %v1203
        %v1210 = vpop.permute.xlu0 %1209
        %1213 = vset.pattern.permute.xlu0 0
        %1214 = vperm.xlu0 %1213, %v1204
        %v1215 = vpop.permute.xlu0 %1214
        %1218 = vset.pattern.permute.xlu0 0
        %1219 = vperm.xlu0 %1218, %v1205
        %v1220 = vpop.permute.xlu0 %1219
        %1223 = vset.pattern.permute.xlu0 0
        %1224 = vperm.xlu0 %1223, %v1206
        %v1225 = vpop.permute.xlu0 %1224
        %s1227 = scalar_lea.vmem %s219, 160 [#allocation2]
        %1228 = vst.msk [vmem:[%s1227] sm:$0xff] %vm255, %v1210
        %1229 = vst.msk [vmem:[%s1227 + $0x8] sm:$0xff] %vm255, %v1215
        %1230 = vst.msk [vmem:[%s1227 + $0x10] sm:$0xff] %vm255, %v1220
        %1231 = vst.msk [vmem:[%s1227 + $0x18] sm:$0xff] %vm255, %v1225
        %s1232 = sand.u32 %s122, 1
        %s1233 = sand.u32 %s122, 1
        %s1234 = smul.addr %s1233, 192
        %s1235 = scalar_lea.vmem [#allocation2], %s1234
        // Predicated region
        $region37: #{tpu_custom_call.1} parent=35 // pred_check
          %p1236 = pneg %p132
        $region38: #{tpu_custom_call.1} parent=35 // pred_check_branch
          %1238 = sbr.rel (%p1236) target = $region40
        $region39: #{tpu_custom_call.1} parent=35 // pred_region
          %s1239 = smul.u32 4, %s15
          %s1240 = smul.addr %s1239, 8
          %s1241 = scalar_lea.vmem %s4, %s1240
          // Predicated region
          $region41: #{tpu_custom_call.1} parent=39 // pred_check
            _
          $region42: #{tpu_custom_call.1} parent=39 // pred_check_branch
            %1243 = sbr.rel (0) target = $region44
          $region43: #{tpu_custom_call.1} parent=39 // pred_region
            // Predicated region
            $region45: #{tpu_custom_call.1} parent=43 // pred_check
              _
            $region46: #{tpu_custom_call.1} parent=43 // pred_check_branch
              %1245 = sbr.rel (0) target = $region48
            $region47: #{tpu_custom_call.1} parent=43 // pred_region
              // Predicated region
              $region60: #{tpu_custom_call.1} parent=47 // pred_check
                _
              $region61: #{tpu_custom_call.1} parent=47 // pred_check_branch
                %1307 = sbr.rel (0) target = $region63
              $region62: #{tpu_custom_call.1} parent=47 // pred_region
                loop: start=0, step=1, limit=1
                $region64: #{tpu_custom_call.1} parent=62 // loop_pre_header
                  _
                $region65: #{tpu_custom_call.1} parent=62 // loop_header
                  %s1309 = sphi 0, %s1313
                  %p1310 = scmp.ge.s32.totalorder %s1309, 1
                  %s1314 = sphi %s1235, %s1235
                  %s1315 = sphi %s1241, %s1241
                $region66: #{tpu_custom_call.1} parent=62 // loop_header_branch
                  %1312 = sbr.rel (%p1310) target = $region70
                $region67: #{tpu_custom_call.1} parent=62 // loop_body
                  %v1316 = vld [vmem:[%s1314] sm:$0xff]
                  %1317 = vst [vmem:[%s1315] sm:$0xff] %v1316
                  %v1318 = vld [vmem:[%s1314 + $0x8] sm:$0xff]
                  %1319 = vst [vmem:[%s1315 + $0x8] sm:$0xff] %v1318
                  %v1320 = vld [vmem:[%s1314 + $0x10] sm:$0xff]
                  %1321 = vst [vmem:[%s1315 + $0x10] sm:$0xff] %v1320
                  %v1322 = vld [vmem:[%s1314 + $0x18] sm:$0xff]
                  %1323 = vst [vmem:[%s1315 + $0x18] sm:$0xff] %v1322
                  %v1324 = vld [vmem:[%s1314 + $0x20] sm:$0xff]
                  %1325 = vst [vmem:[%s1315 + $0x40] sm:$0xff] %v1324
                  %v1326 = vld [vmem:[%s1314 + $0x28] sm:$0xff]
                  %1327 = vst [vmem:[%s1315 + $0x48] sm:$0xff] %v1326
                  %v1328 = vld [vmem:[%s1314 + $0x30] sm:$0xff]
                  %1329 = vst [vmem:[%s1315 + $0x50] sm:$0xff] %v1328
                  %v1330 = vld [vmem:[%s1314 + $0x38] sm:$0xff]
                  %1331 = vst [vmem:[%s1315 + $0x58] sm:$0xff] %v1330
                  %v1332 = vld [vmem:[%s1314 + $0x40] sm:$0xff]
                  %1333 = vst [vmem:[%s1315 + $0x80] sm:$0xff] %v1332
                  %v1334 = vld [vmem:[%s1314 + $0x48] sm:$0xff]
                  %1335 = vst [vmem:[%s1315 + $0x88] sm:$0xff] %v1334
                  %v1336 = vld [vmem:[%s1314 + $0x50] sm:$0xff]
                  %1337 = vst [vmem:[%s1315 + $0x90] sm:$0xff] %v1336
                  %v1338 = vld [vmem:[%s1314 + $0x58] sm:$0xff]
                  %1339 = vst [vmem:[%s1315 + $0x98] sm:$0xff] %v1338
                  %v1340 = vld [vmem:[%s1314 + $0x60] sm:$0xff]
                  %1341 = vst [vmem:[%s1315 + $0xc0] sm:$0xff] %v1340
                  %v1342 = vld [vmem:[%s1314 + $0x68] sm:$0xff]
                  %1343 = vst [vmem:[%s1315 + $0xc8] sm:$0xff] %v1342
                  %v1344 = vld [vmem:[%s1314 + $0x70] sm:$0xff]
                  %1345 = vst [vmem:[%s1315 + $0xd0] sm:$0xff] %v1344
                  %v1346 = vld [vmem:[%s1314 + $0x78] sm:$0xff]
                  %1347 = vst [vmem:[%s1315 + $0xd8] sm:$0xff] %v1346
                  %v1348 = vld [vmem:[%s1314 + $0x80] sm:$0xff]
                  %1349 = vst [vmem:[%s1315 + $0x100] sm:$0xff] %v1348
                  %v1350 = vld [vmem:[%s1314 + $0x88] sm:$0xff]
                  %1351 = vst [vmem:[%s1315 + $0x108] sm:$0xff] %v1350
                  %v1352 = vld [vmem:[%s1314 + $0x90] sm:$0xff]
                  %1353 = vst [vmem:[%s1315 + $0x110] sm:$0xff] %v1352
                  %v1354 = vld [vmem:[%s1314 + $0x98] sm:$0xff]
                  %1355 = vst [vmem:[%s1315 + $0x118] sm:$0xff] %v1354
                  %v1356 = vld [vmem:[%s1314 + $0xa0] sm:$0xff]
                  %1357 = vst [vmem:[%s1315 + $0x140] sm:$0xff] %v1356
                  %v1358 = vld [vmem:[%s1314 + $0xa8] sm:$0xff]
                  %1359 = vst [vmem:[%s1315 + $0x148] sm:$0xff] %v1358
                  %v1360 = vld [vmem:[%s1314 + $0xb0] sm:$0xff]
                  %1361 = vst [vmem:[%s1315 + $0x150] sm:$0xff] %v1360
                  %v1362 = vld [vmem:[%s1314 + $0xb8] sm:$0xff]
                  %1363 = vst [vmem:[%s1315 + $0x158] sm:$0xff] %v1362
                $region68: #{tpu_custom_call.1} parent=62 // loop_footer
                  %s1313 = sadd.s32 1, %s1309
                $region69: #{tpu_custom_call.1} parent=62 // loop_footer_branch
                  %1308 = sbr.rel target = $region65
                $region70: #{tpu_custom_call.1} parent=62 // loop_exit
                  _
              $region63: #{tpu_custom_call.1} parent=47 // pred_fallthru
                _
              // Predicated region
              $region71: #{tpu_custom_call.1} parent=47 // pred_check
                _
              $region72: #{tpu_custom_call.1} parent=47 // pred_check_branch
                %1365 = sbr.rel target = $region74
              $region73: #{tpu_custom_call.1} parent=47 // pred_region
                _
              $region74: #{tpu_custom_call.1} parent=47 // pred_fallthru
                _
            $region48: #{tpu_custom_call.1} parent=43 // pred_fallthru
              _
            // Predicated region
            $region49: #{tpu_custom_call.1} parent=43 // pred_check
              _
            $region50: #{tpu_custom_call.1} parent=43 // pred_check_branch
              %1247 = sbr.rel target = $region52
            $region51: #{tpu_custom_call.1} parent=43 // pred_region
              %s1249 = ssub.s32 256, 1
              loop: start=0, step=1, limit=1
              $region53: #{tpu_custom_call.1} parent=51 // loop_pre_header
                _
              $region54: #{tpu_custom_call.1} parent=51 // loop_header
                %s1251 = sphi 0, %s1255
                %p1252 = scmp.ge.s32.totalorder %s1251, 1
                %s1256 = sphi %s1235, %s1235
                %s1257 = sphi %s1241, %s1241
              $region55: #{tpu_custom_call.1} parent=51 // loop_header_branch
                %1254 = sbr.rel (%p1252) target = $region59
              $region56: #{tpu_custom_call.1} parent=51 // loop_body
                %v1258 = vld [vmem:[%s1256] sm:%s1249]
                %1259 = vst [vmem:[%s1257] sm:%s1249] %v1258
                %v1260 = vld [vmem:[%s1256 + $0x8] sm:%s1249]
                %1261 = vst [vmem:[%s1257 + $0x8] sm:%s1249] %v1260
                %v1262 = vld [vmem:[%s1256 + $0x10] sm:%s1249]
                %1263 = vst [vmem:[%s1257 + $0x10] sm:%s1249] %v1262
                %v1264 = vld [vmem:[%s1256 + $0x18] sm:%s1249]
                %1265 = vst [vmem:[%s1257 + $0x18] sm:%s1249] %v1264
                %v1266 = vld [vmem:[%s1256 + $0x20] sm:%s1249]
                %1267 = vst [vmem:[%s1257 + $0x40] sm:%s1249] %v1266
                %v1268 = vld [vmem:[%s1256 + $0x28] sm:%s1249]
                %1269 = vst [vmem:[%s1257 + $0x48] sm:%s1249] %v1268
                %v1270 = vld [vmem:[%s1256 + $0x30] sm:%s1249]
                %1271 = vst [vmem:[%s1257 + $0x50] sm:%s1249] %v1270
                %v1272 = vld [vmem:[%s1256 + $0x38] sm:%s1249]
                %1273 = vst [vmem:[%s1257 + $0x58] sm:%s1249] %v1272
                %v1274 = vld [vmem:[%s1256 + $0x40] sm:%s1249]
                %1275 = vst [vmem:[%s1257 + $0x80] sm:%s1249] %v1274
                %v1276 = vld [vmem:[%s1256 + $0x48] sm:%s1249]
                %1277 = vst [vmem:[%s1257 + $0x88] sm:%s1249] %v1276
                %v1278 = vld [vmem:[%s1256 + $0x50] sm:%s1249]
                %1279 = vst [vmem:[%s1257 + $0x90] sm:%s1249] %v1278
                %v1280 = vld [vmem:[%s1256 + $0x58] sm:%s1249]
                %1281 = vst [vmem:[%s1257 + $0x98] sm:%s1249] %v1280
                %v1282 = vld [vmem:[%s1256 + $0x60] sm:%s1249]
                %1283 = vst [vmem:[%s1257 + $0xc0] sm:%s1249] %v1282
                %v1284 = vld [vmem:[%s1256 + $0x68] sm:%s1249]
                %1285 = vst [vmem:[%s1257 + $0xc8] sm:%s1249] %v1284
                %v1286 = vld [vmem:[%s1256 + $0x70] sm:%s1249]
                %1287 = vst [vmem:[%s1257 + $0xd0] sm:%s1249] %v1286
                %v1288 = vld [vmem:[%s1256 + $0x78] sm:%s1249]
                %1289 = vst [vmem:[%s1257 + $0xd8] sm:%s1249] %v1288
                %v1290 = vld [vmem:[%s1256 + $0x80] sm:%s1249]
                %1291 = vst [vmem:[%s1257 + $0x100] sm:%s1249] %v1290
                %v1292 = vld [vmem:[%s1256 + $0x88] sm:%s1249]
                %1293 = vst [vmem:[%s1257 + $0x108] sm:%s1249] %v1292
                %v1294 = vld [vmem:[%s1256 + $0x90] sm:%s1249]
                %1295 = vst [vmem:[%s1257 + $0x110] sm:%s1249] %v1294
                %v1296 = vld [vmem:[%s1256 + $0x98] sm:%s1249]
                %1297 = vst [vmem:[%s1257 + $0x118] sm:%s1249] %v1296
                %v1298 = vld [vmem:[%s1256 + $0xa0] sm:%s1249]
                %1299 = vst [vmem:[%s1257 + $0x140] sm:%s1249] %v1298
                %v1300 = vld [vmem:[%s1256 + $0xa8] sm:%s1249]
                %1301 = vst [vmem:[%s1257 + $0x148] sm:%s1249] %v1300
                %v1302 = vld [vmem:[%s1256 + $0xb0] sm:%s1249]
                %1303 = vst [vmem:[%s1257 + $0x150] sm:%s1249] %v1302
                %v1304 = vld [vmem:[%s1256 + $0xb8] sm:%s1249]
                %1305 = vst [vmem:[%s1257 + $0x158] sm:%s1249] %v1304
              $region57: #{tpu_custom_call.1} parent=51 // loop_footer
                %s1255 = sadd.s32 1, %s1251
              $region58: #{tpu_custom_call.1} parent=51 // loop_footer_branch
                %1250 = sbr.rel target = $region54
              $region59: #{tpu_custom_call.1} parent=51 // loop_exit
                _
            $region52: #{tpu_custom_call.1} parent=43 // pred_fallthru
              _
          $region44: #{tpu_custom_call.1} parent=39 // pred_fallthru
            _
          %1366 = vnop
        $region40: #{tpu_custom_call.1} parent=35 // pred_fallthru
          _
      $region36: #{tpu_custom_call.1} parent=5 // pred_fallthru
        _
      %p1367 = scmp.le.s32.totalorder 2, %s10
      // Predicated region
      $region75: #{tpu_custom_call.1} parent=5 // pred_check
        %p1368 = pneg %p1367
      $region76: #{tpu_custom_call.1} parent=5 // pred_check_branch
        %1370 = sbr.rel (%p1368) target = $region78
      $region77: #{tpu_custom_call.1} parent=5 // pred_region
        %s1371 = ssub.s32 %s10, 2
        // Predicated region
        $region79: #{tpu_custom_call.1} parent=77 // pred_check
          %p1372 = pneg %p138
        $region80: #{tpu_custom_call.1} parent=77 // pred_check_branch
          %1374 = sbr.rel (%p1372) target = $region82
        $region81: #{tpu_custom_call.1} parent=77 // pred_region
          %s1375 = sand.u32 %s123, 1
          %s1376 = sand.u32 %s123, 1
          %s1377 = smul.addr %s1376, 192
          %s1378 = scalar_lea.vmem [#allocation2], %s1377
        $region82: #{tpu_custom_call.1} parent=77 // pred_fallthru
          _
      $region78: #{tpu_custom_call.1} parent=5 // pred_fallthru
        _
    $region6: #{tpu_custom_call.1} parent=1 // loop_footer
      %s14 = sadd.s32 1, %s10
    $region7: #{tpu_custom_call.1} parent=1 // loop_footer_branch
      %9 = sbr.rel target = $region3
    $region8: #{tpu_custom_call.1} parent=1 // loop_exit
      _

</llo_original>
